<compile_context>
chip_gen: v5e
topology: v5e:2x2
jax: 0.10.0
libtpu: 0.0.40
codegen_flags: <defaults>
</compile_context>

<pallas_src>
import math
import jax
import jax.numpy as jnp
from jax import lax
from jax.experimental import pallas as pl


# ----------------------------------------------------------------------------- in-kernel helpers

def _ln(x, g, b, eps=1e-5):
    """LayerNorm over the last dim (f32 math)."""
    mu = jnp.mean(x, axis=-1, keepdims=True)
    var = jnp.mean((x - mu) ** 2, axis=-1, keepdims=True)
    return (x - mu) * lax.rsqrt(var + eps) * g + b


def _attend(q, k, v, mask):
    """softmax(q k^T masked) v on flattened rows.

    q:[Nq,D], k/v:[Nk,D], mask:[Nq,Nk] (block-diagonal across batches, 1/sqrt(D)
    already folded into q).  Contraction on the last dims avoids materializing k.T.
    """
    s = lax.dot_general(q, k, (((1,), (1,)), ((), ())),
                        preferred_element_type=jnp.float32)
    s = jnp.where(mask > 0, s, jnp.float32(-1e9))
    s = s - jnp.max(s, axis=-1, keepdims=True)
    p = jnp.exp(s)
    p = p * pl.reciprocal(jnp.sum(p, axis=-1, keepdims=True), approx=True)
    return jnp.dot(p, v, preferred_element_type=jnp.float32)


# ----------------------------------------------------------------------------- fused kernels

def encoder_kernel(x_ref, mask_ref,
                   wqkv_ref, bqkv_ref, wo_ref, bo_ref, ln1g_ref, ln1b_ref,
                   w1_ref, b1_ref, w2_ref, b2_ref, ln2g_ref, ln2b_ref,
                   o_ref):
    """One full encoder layer on the flattened (B*S, D) activations."""
    x = x_ref[...].astype(jnp.float32)
    D = x.shape[-1]

    # fused QKV projection (scale pre-folded into the Q columns)
    qkv = jnp.dot(x, wqkv_ref[...], preferred_element_type=jnp.float32) + bqkv_ref[...]
    a = _attend(qkv[:, :D], qkv[:, D:2 * D], qkv[:, 2 * D:], mask_ref[...])
    a = jnp.dot(a, wo_ref[...], preferred_element_type=jnp.float32) + bo_ref[...]
    x1 = _ln(x + a, ln1g_ref[...], ln1b_ref[...])

    # position-wise FFN + residual + LN
    h = jnp.maximum(jnp.dot(x1, w1_ref[...], preferred_element_type=jnp.float32)
                    + b1_ref[...], 0.0)
    h = jnp.dot(h, w2_ref[...], preferred_element_type=jnp.float32) + b2_ref[...]
    x2 = _ln(x1 + h, ln2g_ref[...], ln2b_ref[...])

    o_ref[...] = x2.astype(o_ref.dtype)


def decoder_kernel(y_ref, mem_ref, smask_ref, cmask_ref,
                   sa_wqkv_ref, sa_bqkv_ref, sa_wo_ref, sa_bo_ref, ln1g_ref, ln1b_ref,
                   ca_wq_ref, ca_bq_ref, ca_wkv_ref, ca_bkv_ref, ca_wo_ref, ca_bo_ref,
                   ln2g_ref, ln2b_ref,
                   ff_w1_ref, ff_b1_ref, ff_w2_ref, ff_b2_ref, ln3g_ref, ln3b_ref,
                   o_ref):
    """One full decoder layer: masked self-attn, cross-attn over memory, FFN, 3 LNs."""
    y = y_ref[...].astype(jnp.float32)
    mem = mem_ref[...].astype(jnp.float32)
    D = y.shape[-1]

    # masked self-attention (fused QKV)
    qkv = jnp.dot(y, sa_wqkv_ref[...], preferred_element_type=jnp.float32) + sa_bqkv_ref[...]
    a = _attend(qkv[:, :D], qkv[:, D:2 * D], qkv[:, 2 * D:], smask_ref[...])
    a = jnp.dot(a, sa_wo_ref[...], preferred_element_type=jnp.float32) + sa_bo_ref[...]
    y1 = _ln(y + a, ln1g_ref[...], ln1b_ref[...])

    # cross-attention over encoder memory (fused KV)
    q = jnp.dot(y1, ca_wq_ref[...], preferred_element_type=jnp.float32) + ca_bq_ref[...]
    kv = jnp.dot(mem, ca_wkv_ref[...], preferred_element_type=jnp.float32) + ca_bkv_ref[...]
    c = _attend(q, kv[:, :D], kv[:, D:], cmask_ref[...])
    c = jnp.dot(c, ca_wo_ref[...], preferred_element_type=jnp.float32) + ca_bo_ref[...]
    y2 = _ln(y1 + c, ln2g_ref[...], ln2b_ref[...])

    # position-wise FFN + residual + LN
    h = jnp.maximum(jnp.dot(y2, ff_w1_ref[...], preferred_element_type=jnp.float32)
                    + ff_b1_ref[...], 0.0)
    h = jnp.dot(h, ff_w2_ref[...], preferred_element_type=jnp.float32) + ff_b2_ref[...]
    y3 = _ln(y2 + h, ln3g_ref[...], ln3b_ref[...])

    o_ref[...] = y3.astype(o_ref.dtype)


def generator_kernel(x_ref, w_ref, b_ref, o_ref):
    """log_softmax(x @ w + b) over the vocab dim (exact LSE)."""
    logits = jnp.dot(x_ref[...].astype(jnp.float32), w_ref[...],
                     preferred_element_type=jnp.float32) + b_ref[...]
    m = jnp.max(logits, axis=-1, keepdims=True)
    z = logits - m
    lse = jnp.log(jnp.sum(jnp.exp(z), axis=-1, keepdims=True))
    o_ref[...] = (z - lse).astype(o_ref.dtype)


# ----------------------------------------------------------------------------- model glue

def positional_encoding(L, D):
    pos = jnp.arange(L, dtype=jnp.float32)[:, None]
    i = jnp.arange(0, D, 2, dtype=jnp.float32)
    div = jnp.exp(-math.log(10000.0) * i / D)
    pe = jnp.zeros((L, D), jnp.float32)
    pe = pe.at[:, 0::2].set(jnp.sin(pos * div))
    pe = pe.at[:, 1::2].set(jnp.cos(pos * div))
    return pe


def embed(ids, table, D):
    # TODO(synk): embedding gather kept in plain JAX (no clean tiny-shape Pallas gather).
    x = jnp.take(table, ids, axis=0) * math.sqrt(D)
    L = ids.shape[1]
    return x + positional_encoding(L, D)[None, :, :]


def block_diag_mask(mask):
    """(B, T, S) per-batch mask -> (B*T, B*S) block-diagonal mask for flattened attention."""
    B, T, S = mask.shape
    eye = jnp.eye(B, dtype=mask.dtype)
    big = mask[:, :, None, :] * eye[:, None, :, None]      # (B, T, B, S)
    return big.reshape(B * T, B * S)


def encoder_decoder_forward(params, src, src_mask, tgt, tgt_mask, D, H, V):
    B, S = src.shape
    T = tgt.shape[1]
    scale = 1.0 / math.sqrt(D)

    # embeddings (+ sinusoidal positions), flattened to (rows, D)
    x = embed(src, params["src_emb"], D).reshape(B * S, D)
    y = embed(tgt, params["tgt_emb"], D).reshape(B * T, D)

    # flattened block-diagonal masks (tiny one-time glue)
    enc_mask = block_diag_mask(jnp.broadcast_to(src_mask, (B, S, S)).astype(jnp.float32))
    dec_smask = block_diag_mask(tgt_mask.astype(jnp.float32))
    dec_cmask = block_diag_mask(jnp.broadcast_to(src_mask, (B, T, S)).astype(jnp.float32))

    def row(v):
        return v.reshape(1, -1)

    def qkv_fused(prefix):
        # fold 1/sqrt(D) into the Q projection; one (D, 3D) weight / (1, 3D) bias
        w = jnp.concatenate([params[prefix + "_wq"] * scale,
                             params[prefix + "_wk"],
                             params[prefix + "_wv"]], axis=1)
        b = jnp.concatenate([params[prefix + "_bq"] * scale,
                             params[prefix + "_bk"],
                             params[prefix + "_bv"]]).reshape(1, -1)
        return w, b

    enc_wqkv, enc_bqkv = qkv_fused("enc_sa")
    sa_wqkv, sa_bqkv = qkv_fused("dec_sa")
    ca_wq = params["dec_ca_wq"] * scale
    ca_bq = (params["dec_ca_bq"] * scale).reshape(1, -1)
    ca_wkv = jnp.concatenate([params["dec_ca_wk"], params["dec_ca_wv"]], axis=1)
    ca_bkv = jnp.concatenate([params["dec_ca_bk"], params["dec_ca_bv"]]).reshape(1, -1)

    # ---- fused encoder layer (one launch) ----
    memory = pl.pallas_call(
        encoder_kernel,
        out_shape=jax.ShapeDtypeStruct((B * S, D), jnp.float32),
    )(x, enc_mask,
      enc_wqkv, enc_bqkv, params["enc_sa_wo"], row(params["enc_sa_bo"]),
      row(params["enc_ln1_g"]), row(params["enc_ln1_b"]),
      params["enc_ff_w1"], row(params["enc_ff_b1"]),
      params["enc_ff_w2"], row(params["enc_ff_b2"]),
      row(params["enc_ln2_g"]), row(params["enc_ln2_b"]))

    # ---- fused decoder layer (one launch) ----
    dec = pl.pallas_call(
        decoder_kernel,
        out_shape=jax.ShapeDtypeStruct((B * T, D), jnp.float32),
    )(y, memory, dec_smask, dec_cmask,
      sa_wqkv, sa_bqkv, params["dec_sa_wo"], row(params["dec_sa_bo"]),
      row(params["dec_ln1_g"]), row(params["dec_ln1_b"]),
      ca_wq, ca_bq, ca_wkv, ca_bkv, params["dec_ca_wo"], row(params["dec_ca_bo"]),
      row(params["dec_ln2_g"]), row(params["dec_ln2_b"]),
      params["dec_ff_w1"], row(params["dec_ff_b1"]),
      params["dec_ff_w2"], row(params["dec_ff_b2"]),
      row(params["dec_ln3_g"]), row(params["dec_ln3_b"]))

    # ---- generator: linear + log_softmax (one launch) ----
    logp = pl.pallas_call(
        generator_kernel,
        out_shape=jax.ShapeDtypeStruct((B * T, V), jnp.float32),
    )(dec, params["gen_w"], row(params["gen_b"]))

    return logp.reshape(B, T, V)


# ----------------------------------------------------------------------------- params

def init_params(key, D, H, V):
    params = {}
    ks = iter(jax.random.split(key, 64))

    def dense(din, dout):
        return jax.random.normal(next(ks), (din, dout), jnp.float32) / math.sqrt(din)

    params["src_emb"] = jax.random.normal(next(ks), (V, D), jnp.float32) * 0.02
    params["tgt_emb"] = jax.random.normal(next(ks), (V, D), jnp.float32) * 0.02

    for prefix in ["enc_sa", "dec_sa", "dec_ca"]:
        for name in ["wq", "wk", "wv", "wo"]:
            params[f"{prefix}_{name}"] = dense(D, D)
            params[f"{prefix}_b{name[-1]}"] = jnp.zeros((D,), jnp.float32)
    for prefix in ["enc_ff", "dec_ff"]:
        params[f"{prefix}_w1"] = dense(D, H)
        params[f"{prefix}_b1"] = jnp.zeros((H,), jnp.float32)
        params[f"{prefix}_w2"] = dense(H, D)
        params[f"{prefix}_b2"] = jnp.zeros((D,), jnp.float32)
    for name in ["enc_ln1", "enc_ln2", "dec_ln1", "dec_ln2", "dec_ln3"]:
        params[f"{name}_g"] = jnp.ones((D,), jnp.float32)
        params[f"{name}_b"] = jnp.zeros((D,), jnp.float32)

    params["gen_w"] = dense(D, V)
    params["gen_b"] = jnp.zeros((V,), jnp.float32)
    return params


# ----------------------------------------------------------------------------- main

if __name__ == "__main__":
    B, S, T, D, H, V = 2, 8, 8, 32, 64, 64

    key = jax.random.PRNGKey(0)
    k_src, k_tgt, k_par = jax.random.split(key, 3)

    src = jax.random.randint(k_src, (B, S), 0, V, dtype=jnp.int32)
    tgt = jax.random.randint(k_tgt, (B, T), 0, V, dtype=jnp.int32)

    # src_mask: [B, 1, S] padding mask (batch 1 has 2 padded positions)
    src_mask = jnp.ones((B, 1, S), jnp.float32)
    src_mask = src_mask.at[1, 0, S - 2:].set(0.0)
    # tgt_mask: [B, T, T] causal mask
    tgt_mask = jnp.broadcast_to(jnp.tril(jnp.ones((T, T), jnp.float32)), (B, T, T))

    params = init_params(k_par, D, H, V)

    fwd = jax.jit(lambda p, s, sm, t, tm: encoder_decoder_forward(p, s, sm, t, tm, D, H, V))
    out = fwd(params, src, src_mask, tgt, tgt_mask)
    out = jax.block_until_ready(out)

    assert out.shape == (B, T, V), out.shape
    # log_softmax rows should sum to ~1 in prob space
    assert bool(jnp.all(jnp.isfinite(out)))
    assert bool(jnp.allclose(jnp.sum(jnp.exp(out), axis=-1), 1.0, atol=1e-3))

    print("KERNEL_OK")
</pallas_src>

<mosaic_0001>
module attributes {stable_mosaic.version = 11 : i64} {
  func.func @encoder_kernel(%arg0: memref<16x32xf32, #tpu.memory_space<vmem>>, %arg1: memref<16x16xf32, #tpu.memory_space<vmem>>, %arg2: memref<32x96xf32, #tpu.memory_space<vmem>>, %arg3: memref<1x96xf32, #tpu.memory_space<vmem>>, %arg4: memref<32x32xf32, #tpu.memory_space<vmem>>, %arg5: memref<1x32xf32, #tpu.memory_space<vmem>>, %arg6: memref<1x32xf32, #tpu.memory_space<vmem>>, %arg7: memref<1x32xf32, #tpu.memory_space<vmem>>, %arg8: memref<32x64xf32, #tpu.memory_space<vmem>>, %arg9: memref<1x64xf32, #tpu.memory_space<vmem>>, %arg10: memref<64x32xf32, #tpu.memory_space<vmem>>, %arg11: memref<1x32xf32, #tpu.memory_space<vmem>>, %arg12: memref<1x32xf32, #tpu.memory_space<vmem>>, %arg13: memref<1x32xf32, #tpu.memory_space<vmem>>, %arg14: memref<16x32xf32, #tpu.memory_space<vmem>>) attributes {dimension_semantics = [], scalar_prefetch = 0 : i64, scratch_operands = 0 : i64, tpu.core_type = #tpu.core_type<tc>} {
    %c0 = arith.constant 0 : index
    %c0_0 = arith.constant 0 : index
    %0 = vector.load %arg0[%c0, %c0_0] : memref<16x32xf32, #tpu.memory_space<vmem>>, vector<16x32xf32>
    %c0_1 = arith.constant 0 : index
    %c0_2 = arith.constant 0 : index
    %1 = vector.load %arg2[%c0_1, %c0_2] : memref<32x96xf32, #tpu.memory_space<vmem>>, vector<32x96xf32>
    %cst = arith.constant dense<0.000000e+00> : vector<16x96xf32>
    %2 = tpu.matmul %0, %1, %cst {dimension_numbers = #tpu.dot_dimension_numbers<[1], [0], [0], [1], [0, 0, 1, 1], [], []>} : vector<16x32xf32>, vector<32x96xf32>, vector<16x96xf32> -> vector<16x96xf32>
    %c0_3 = arith.constant 0 : index
    %c0_4 = arith.constant 0 : index
    %3 = vector.load %arg3[%c0_3, %c0_4] : memref<1x96xf32, #tpu.memory_space<vmem>>, vector<1x96xf32>
    %4 = vector.broadcast %3 : vector<1x96xf32> to vector<16x96xf32>
    %5 = arith.addf %2, %4 : vector<16x96xf32>
    %6 = vector.extract_strided_slice %5 {offsets = [0, 0], sizes = [16, 32], strides = [1, 1]} : vector<16x96xf32> to vector<16x32xf32>
    %7 = vector.extract_strided_slice %5 {offsets = [0, 32], sizes = [16, 32], strides = [1, 1]} : vector<16x96xf32> to vector<16x32xf32>
    %8 = vector.extract_strided_slice %5 {offsets = [0, 64], sizes = [16, 32], strides = [1, 1]} : vector<16x96xf32> to vector<16x32xf32>
    %c0_5 = arith.constant 0 : index
    %c0_6 = arith.constant 0 : index
    %9 = vector.load %arg1[%c0_5, %c0_6] : memref<16x16xf32, #tpu.memory_space<vmem>>, vector<16x16xf32>
    %cst_7 = arith.constant dense<0.000000e+00> : vector<16x16xf32>
    %10 = tpu.matmul %6, %7, %cst_7 {dimension_numbers = #tpu.dot_dimension_numbers<[1], [1], [0], [0], [0, 0, 1, 0], [], []>} : vector<16x32xf32>, vector<16x32xf32>, vector<16x16xf32> -> vector<16x16xf32>
    %cst_8 = arith.constant 0.000000e+00 : f32
    %11 = vector.broadcast %cst_8 : f32 to vector<16x16xf32>
    %12 = arith.cmpf ogt, %9, %11 : vector<16x16xf32>
    %cst_9 = arith.constant -1.000000e+09 : f32
    %13 = vector.broadcast %cst_9 : f32 to vector<16x16xf32>
    %14 = arith.select %12, %10, %13 : vector<16x16xi1>, vector<16x16xf32>
    %cst_10 = arith.constant dense<0xFF800000> : vector<16xf32>
    %15 = vector.multi_reduction <maximumf>, %14, %cst_10 [1] : vector<16x16xf32> to vector<16xf32>
    %16 = vector.shape_cast %15 : vector<16xf32> to vector<16x1xf32>
    %17 = vector.broadcast %16 : vector<16x1xf32> to vector<16x16xf32>
    %18 = arith.subf %14, %17 : vector<16x16xf32>
    %19 = math.exp %18 : vector<16x16xf32>
    %cst_11 = arith.constant dense<0.000000e+00> : vector<16xf32>
    %20 = vector.multi_reduction <add>, %19, %cst_11 [1] : vector<16x16xf32> to vector<16xf32>
    %21 = vector.shape_cast %20 : vector<16xf32> to vector<16x1xf32>
    %22 = tpu.reciprocal %21 {approx = true} : vector<16x1xf32> -> vector<16x1xf32>
    %23 = vector.broadcast %22 : vector<16x1xf32> to vector<16x16xf32>
    %24 = arith.mulf %19, %23 : vector<16x16xf32>
    %cst_12 = arith.constant dense<0.000000e+00> : vector<16x32xf32>
    %25 = tpu.matmul %24, %8, %cst_12 {dimension_numbers = #tpu.dot_dimension_numbers<[1], [0], [0], [1], [0, 0, 1, 1], [], []>} : vector<16x16xf32>, vector<16x32xf32>, vector<16x32xf32> -> vector<16x32xf32>
    %c0_13 = arith.constant 0 : index
    %c0_14 = arith.constant 0 : index
    %26 = vector.load %arg4[%c0_13, %c0_14] : memref<32x32xf32, #tpu.memory_space<vmem>>, vector<32x32xf32>
    %cst_15 = arith.constant dense<0.000000e+00> : vector<16x32xf32>
    %27 = tpu.matmul %25, %26, %cst_15 {dimension_numbers = #tpu.dot_dimension_numbers<[1], [0], [0], [1], [0, 0, 1, 1], [], []>} : vector<16x32xf32>, vector<32x32xf32>, vector<16x32xf32> -> vector<16x32xf32>
    %c0_16 = arith.constant 0 : index
    %c0_17 = arith.constant 0 : index
    %28 = vector.load %arg5[%c0_16, %c0_17] : memref<1x32xf32, #tpu.memory_space<vmem>>, vector<1x32xf32>
    %29 = vector.broadcast %28 : vector<1x32xf32> to vector<16x32xf32>
    %30 = arith.addf %27, %29 : vector<16x32xf32>
    %31 = arith.addf %0, %30 : vector<16x32xf32>
    %c0_18 = arith.constant 0 : index
    %c0_19 = arith.constant 0 : index
    %32 = vector.load %arg6[%c0_18, %c0_19] : memref<1x32xf32, #tpu.memory_space<vmem>>, vector<1x32xf32>
    %c0_20 = arith.constant 0 : index
    %c0_21 = arith.constant 0 : index
    %33 = vector.load %arg7[%c0_20, %c0_21] : memref<1x32xf32, #tpu.memory_space<vmem>>, vector<1x32xf32>
    %cst_22 = arith.constant dense<0.000000e+00> : vector<16xf32>
    %34 = vector.multi_reduction <add>, %31, %cst_22 [1] : vector<16x32xf32> to vector<16xf32>
    %35 = vector.shape_cast %34 : vector<16xf32> to vector<16x1xf32>
    %cst_23 = arith.constant 3.200000e+01 : f32
    %36 = vector.broadcast %cst_23 : f32 to vector<16x1xf32>
    %37 = arith.divf %35, %36 : vector<16x1xf32>
    %38 = vector.broadcast %37 : vector<16x1xf32> to vector<16x32xf32>
    %39 = arith.subf %31, %38 : vector<16x32xf32>
    %40 = arith.mulf %39, %39 : vector<16x32xf32>
    %cst_24 = arith.constant dense<0.000000e+00> : vector<16xf32>
    %41 = vector.multi_reduction <add>, %40, %cst_24 [1] : vector<16x32xf32> to vector<16xf32>
    %42 = vector.shape_cast %41 : vector<16xf32> to vector<16x1xf32>
    %cst_25 = arith.constant 3.200000e+01 : f32
    %43 = vector.broadcast %cst_25 : f32 to vector<16x1xf32>
    %44 = arith.divf %42, %43 : vector<16x1xf32>
    %45 = vector.broadcast %37 : vector<16x1xf32> to vector<16x32xf32>
    %46 = arith.subf %31, %45 : vector<16x32xf32>
    %cst_26 = arith.constant 9.99999974E-6 : f32
    %47 = vector.broadcast %cst_26 : f32 to vector<16x1xf32>
    %48 = arith.addf %44, %47 : vector<16x1xf32>
    %49 = math.rsqrt %48 : vector<16x1xf32>
    %50 = vector.broadcast %49 : vector<16x1xf32> to vector<16x32xf32>
    %51 = arith.mulf %46, %50 : vector<16x32xf32>
    %52 = vector.broadcast %32 : vector<1x32xf32> to vector<16x32xf32>
    %53 = arith.mulf %51, %52 : vector<16x32xf32>
    %54 = vector.broadcast %33 : vector<1x32xf32> to vector<16x32xf32>
    %55 = arith.addf %53, %54 : vector<16x32xf32>
    %c0_27 = arith.constant 0 : index
    %c0_28 = arith.constant 0 : index
    %56 = vector.load %arg8[%c0_27, %c0_28] : memref<32x64xf32, #tpu.memory_space<vmem>>, vector<32x64xf32>
    %cst_29 = arith.constant dense<0.000000e+00> : vector<16x64xf32>
    %57 = tpu.matmul %55, %56, %cst_29 {dimension_numbers = #tpu.dot_dimension_numbers<[1], [0], [0], [1], [0, 0, 1, 1], [], []>} : vector<16x32xf32>, vector<32x64xf32>, vector<16x64xf32> -> vector<16x64xf32>
    %c0_30 = arith.constant 0 : index
    %c0_31 = arith.constant 0 : index
    %58 = vector.load %arg9[%c0_30, %c0_31] : memref<1x64xf32, #tpu.memory_space<vmem>>, vector<1x64xf32>
    %59 = vector.broadcast %58 : vector<1x64xf32> to vector<16x64xf32>
    %60 = arith.addf %57, %59 : vector<16x64xf32>
    %cst_32 = arith.constant 0.000000e+00 : f32
    %61 = vector.broadcast %cst_32 : f32 to vector<16x64xf32>
    %62 = arith.maximumf %60, %61 : vector<16x64xf32>
    %c0_33 = arith.constant 0 : index
    %c0_34 = arith.constant 0 : index
    %63 = vector.load %arg10[%c0_33, %c0_34] : memref<64x32xf32, #tpu.memory_space<vmem>>, vector<64x32xf32>
    %cst_35 = arith.constant dense<0.000000e+00> : vector<16x32xf32>
    %64 = tpu.matmul %62, %63, %cst_35 {dimension_numbers = #tpu.dot_dimension_numbers<[1], [0], [0], [1], [0, 0, 1, 1], [], []>} : vector<16x64xf32>, vector<64x32xf32>, vector<16x32xf32> -> vector<16x32xf32>
    %c0_36 = arith.constant 0 : index
    %c0_37 = arith.constant 0 : index
    %65 = vector.load %arg11[%c0_36, %c0_37] : memref<1x32xf32, #tpu.memory_space<vmem>>, vector<1x32xf32>
    %66 = vector.broadcast %65 : vector<1x32xf32> to vector<16x32xf32>
    %67 = arith.addf %64, %66 : vector<16x32xf32>
    %68 = arith.addf %55, %67 : vector<16x32xf32>
    %c0_38 = arith.constant 0 : index
    %c0_39 = arith.constant 0 : index
    %69 = vector.load %arg12[%c0_38, %c0_39] : memref<1x32xf32, #tpu.memory_space<vmem>>, vector<1x32xf32>
    %c0_40 = arith.constant 0 : index
    %c0_41 = arith.constant 0 : index
    %70 = vector.load %arg13[%c0_40, %c0_41] : memref<1x32xf32, #tpu.memory_space<vmem>>, vector<1x32xf32>
    %cst_42 = arith.constant dense<0.000000e+00> : vector<16xf32>
    %71 = vector.multi_reduction <add>, %68, %cst_42 [1] : vector<16x32xf32> to vector<16xf32>
    %72 = vector.shape_cast %71 : vector<16xf32> to vector<16x1xf32>
    %cst_43 = arith.constant 3.200000e+01 : f32
    %73 = vector.broadcast %cst_43 : f32 to vector<16x1xf32>
    %74 = arith.divf %72, %73 : vector<16x1xf32>
    %75 = vector.broadcast %74 : vector<16x1xf32> to vector<16x32xf32>
    %76 = arith.subf %68, %75 : vector<16x32xf32>
    %77 = arith.mulf %76, %76 : vector<16x32xf32>
    %cst_44 = arith.constant dense<0.000000e+00> : vector<16xf32>
    %78 = vector.multi_reduction <add>, %77, %cst_44 [1] : vector<16x32xf32> to vector<16xf32>
    %79 = vector.shape_cast %78 : vector<16xf32> to vector<16x1xf32>
    %cst_45 = arith.constant 3.200000e+01 : f32
    %80 = vector.broadcast %cst_45 : f32 to vector<16x1xf32>
    %81 = arith.divf %79, %80 : vector<16x1xf32>
    %82 = vector.broadcast %74 : vector<16x1xf32> to vector<16x32xf32>
    %83 = arith.subf %68, %82 : vector<16x32xf32>
    %cst_46 = arith.constant 9.99999974E-6 : f32
    %84 = vector.broadcast %cst_46 : f32 to vector<16x1xf32>
    %85 = arith.addf %81, %84 : vector<16x1xf32>
    %86 = math.rsqrt %85 : vector<16x1xf32>
    %87 = vector.broadcast %86 : vector<16x1xf32> to vector<16x32xf32>
    %88 = arith.mulf %83, %87 : vector<16x32xf32>
    %89 = vector.broadcast %69 : vector<1x32xf32> to vector<16x32xf32>
    %90 = arith.mulf %88, %89 : vector<16x32xf32>
    %91 = vector.broadcast %70 : vector<1x32xf32> to vector<16x32xf32>
    %92 = arith.addf %90, %91 : vector<16x32xf32>
    %c0_47 = arith.constant 0 : index
    %c0_48 = arith.constant 0 : index
    %93 = vector.load %arg14[%c0_47, %c0_48] : memref<16x32xf32, #tpu.memory_space<vmem>>, vector<16x32xf32>
    tpu.vector_store %arg14[%c0_47, %c0_48], %92 {strides = array<i32>} : memref<16x32xf32, #tpu.memory_space<vmem>>, vector<16x32xf32>,
    return
  }
}

module attributes {stable_mosaic.version = 11 : i64} {
  func.func @generator_kernel(%arg0: memref<16x32xf32, #tpu.memory_space<vmem>>, %arg1: memref<32x64xf32, #tpu.memory_space<vmem>>, %arg2: memref<1x64xf32, #tpu.memory_space<vmem>>, %arg3: memref<16x64xf32, #tpu.memory_space<vmem>>) attributes {dimension_semantics = [], scalar_prefetch = 0 : i64, scratch_operands = 0 : i64, tpu.core_type = #tpu.core_type<tc>} {
    %c0 = arith.constant 0 : index
    %c0_0 = arith.constant 0 : index
    %0 = vector.load %arg0[%c0, %c0_0] : memref<16x32xf32, #tpu.memory_space<vmem>>, vector<16x32xf32>
    %c0_1 = arith.constant 0 : index
    %c0_2 = arith.constant 0 : index
    %1 = vector.load %arg1[%c0_1, %c0_2] : memref<32x64xf32, #tpu.memory_space<vmem>>, vector<32x64xf32>
    %cst = arith.constant dense<0.000000e+00> : vector<16x64xf32>
    %2 = tpu.matmul %0, %1, %cst {dimension_numbers = #tpu.dot_dimension_numbers<[1], [0], [0], [1], [0, 0, 1, 1], [], []>} : vector<16x32xf32>, vector<32x64xf32>, vector<16x64xf32> -> vector<16x64xf32>
    %c0_3 = arith.constant 0 : index
    %c0_4 = arith.constant 0 : index
    %3 = vector.load %arg2[%c0_3, %c0_4] : memref<1x64xf32, #tpu.memory_space<vmem>>, vector<1x64xf32>
    %4 = vector.broadcast %3 : vector<1x64xf32> to vector<16x64xf32>
    %5 = arith.addf %2, %4 : vector<16x64xf32>
    %cst_5 = arith.constant dense<0xFF800000> : vector<16xf32>
    %6 = vector.multi_reduction <maximumf>, %5, %cst_5 [1] : vector<16x64xf32> to vector<16xf32>
    %7 = vector.shape_cast %6 : vector<16xf32> to vector<16x1xf32>
    %8 = vector.broadcast %7 : vector<16x1xf32> to vector<16x64xf32>
    %9 = arith.subf %5, %8 : vector<16x64xf32>
    %10 = math.exp %9 : vector<16x64xf32>
    %cst_6 = arith.constant dense<0.000000e+00> : vector<16xf32>
    %11 = vector.multi_reduction <add>, %10, %cst_6 [1] : vector<16x64xf32> to vector<16xf32>
    %12 = vector.shape_cast %11 : vector<16xf32> to vector<16x1xf32>
    %13 = math.log %12 : vector<16x1xf32>
    %14 = vector.broadcast %13 : vector<16x1xf32> to vector<16x64xf32>
    %15 = arith.subf %9, %14 : vector<16x64xf32>
    %c0_7 = arith.constant 0 : index
    %c0_8 = arith.constant 0 : index
    %16 = vector.load %arg3[%c0_7, %c0_8] : memref<16x64xf32, #tpu.memory_space<vmem>>, vector<16x64xf32>
    tpu.vector_store %arg3[%c0_7, %c0_8], %15 {strides = array<i32>} : memref<16x64xf32, #tpu.memory_space<vmem>>, vector<16x64xf32>,
    return
  }
}

module attributes {stable_mosaic.version = 11 : i64} {
  func.func @decoder_kernel(%arg0: memref<16x32xf32, #tpu.memory_space<vmem>>, %arg1: memref<16x32xf32, #tpu.memory_space<vmem>>, %arg2: memref<16x16xf32, #tpu.memory_space<vmem>>, %arg3: memref<16x16xf32, #tpu.memory_space<vmem>>, %arg4: memref<32x96xf32, #tpu.memory_space<vmem>>, %arg5: memref<1x96xf32, #tpu.memory_space<vmem>>, %arg6: memref<32x32xf32, #tpu.memory_space<vmem>>, %arg7: memref<1x32xf32, #tpu.memory_space<vmem>>, %arg8: memref<1x32xf32, #tpu.memory_space<vmem>>, %arg9: memref<1x32xf32, #tpu.memory_space<vmem>>, %arg10: memref<32x32xf32, #tpu.memory_space<vmem>>, %arg11: memref<1x32xf32, #tpu.memory_space<vmem>>, %arg12: memref<32x64xf32, #tpu.memory_space<vmem>>, %arg13: memref<1x64xf32, #tpu.memory_space<vmem>>, %arg14: memref<32x32xf32, #tpu.memory_space<vmem>>, %arg15: memref<1x32xf32, #tpu.memory_space<vmem>>, %arg16: memref<1x32xf32, #tpu.memory_space<vmem>>, %arg17: memref<1x32xf32, #tpu.memory_space<vmem>>, %arg18: memref<32x64xf32, #tpu.memory_space<vmem>>, %arg19: memref<1x64xf32, #tpu.memory_space<vmem>>, %arg20: memref<64x32xf32, #tpu.memory_space<vmem>>, %arg21: memref<1x32xf32, #tpu.memory_space<vmem>>, %arg22: memref<1x32xf32, #tpu.memory_space<vmem>>, %arg23: memref<1x32xf32, #tpu.memory_space<vmem>>, %arg24: memref<16x32xf32, #tpu.memory_space<vmem>>) attributes {dimension_semantics = [], scalar_prefetch = 0 : i64, scratch_operands = 0 : i64, tpu.core_type = #tpu.core_type<tc>} {
    %c0 = arith.constant 0 : index
    %c0_0 = arith.constant 0 : index
    %0 = vector.load %arg0[%c0, %c0_0] : memref<16x32xf32, #tpu.memory_space<vmem>>, vector<16x32xf32>
    %c0_1 = arith.constant 0 : index
    %c0_2 = arith.constant 0 : index
    %1 = vector.load %arg1[%c0_1, %c0_2] : memref<16x32xf32, #tpu.memory_space<vmem>>, vector<16x32xf32>
    %c0_3 = arith.constant 0 : index
    %c0_4 = arith.constant 0 : index
    %2 = vector.load %arg4[%c0_3, %c0_4] : memref<32x96xf32, #tpu.memory_space<vmem>>, vector<32x96xf32>
    %cst = arith.constant dense<0.000000e+00> : vector<16x96xf32>
    %3 = tpu.matmul %0, %2, %cst {dimension_numbers = #tpu.dot_dimension_numbers<[1], [0], [0], [1], [0, 0, 1, 1], [], []>} : vector<16x32xf32>, vector<32x96xf32>, vector<16x96xf32> -> vector<16x96xf32>
    %c0_5 = arith.constant 0 : index
    %c0_6 = arith.constant 0 : index
    %4 = vector.load %arg5[%c0_5, %c0_6] : memref<1x96xf32, #tpu.memory_space<vmem>>, vector<1x96xf32>
    %5 = vector.broadcast %4 : vector<1x96xf32> to vector<16x96xf32>
    %6 = arith.addf %3, %5 : vector<16x96xf32>
    %7 = vector.extract_strided_slice %6 {offsets = [0, 0], sizes = [16, 32], strides = [1, 1]} : vector<16x96xf32> to vector<16x32xf32>
    %8 = vector.extract_strided_slice %6 {offsets = [0, 32], sizes = [16, 32], strides = [1, 1]} : vector<16x96xf32> to vector<16x32xf32>
    %9 = vector.extract_strided_slice %6 {offsets = [0, 64], sizes = [16, 32], strides = [1, 1]} : vector<16x96xf32> to vector<16x32xf32>
    %c0_7 = arith.constant 0 : index
    %c0_8 = arith.constant 0 : index
    %10 = vector.load %arg2[%c0_7, %c0_8] : memref<16x16xf32, #tpu.memory_space<vmem>>, vector<16x16xf32>
    %cst_9 = arith.constant dense<0.000000e+00> : vector<16x16xf32>
    %11 = tpu.matmul %7, %8, %cst_9 {dimension_numbers = #tpu.dot_dimension_numbers<[1], [1], [0], [0], [0, 0, 1, 0], [], []>} : vector<16x32xf32>, vector<16x32xf32>, vector<16x16xf32> -> vector<16x16xf32>
    %cst_10 = arith.constant 0.000000e+00 : f32
    %12 = vector.broadcast %cst_10 : f32 to vector<16x16xf32>
    %13 = arith.cmpf ogt, %10, %12 : vector<16x16xf32>
    %cst_11 = arith.constant -1.000000e+09 : f32
    %14 = vector.broadcast %cst_11 : f32 to vector<16x16xf32>
    %15 = arith.select %13, %11, %14 : vector<16x16xi1>, vector<16x16xf32>
    %cst_12 = arith.constant dense<0xFF800000> : vector<16xf32>
    %16 = vector.multi_reduction <maximumf>, %15, %cst_12 [1] : vector<16x16xf32> to vector<16xf32>
    %17 = vector.shape_cast %16 : vector<16xf32> to vector<16x1xf32>
    %18 = vector.broadcast %17 : vector<16x1xf32> to vector<16x16xf32>
    %19 = arith.subf %15, %18 : vector<16x16xf32>
    %20 = math.exp %19 : vector<16x16xf32>
    %cst_13 = arith.constant dense<0.000000e+00> : vector<16xf32>
    %21 = vector.multi_reduction <add>, %20, %cst_13 [1] : vector<16x16xf32> to vector<16xf32>
    %22 = vector.shape_cast %21 : vector<16xf32> to vector<16x1xf32>
    %23 = tpu.reciprocal %22 {approx = true} : vector<16x1xf32> -> vector<16x1xf32>
    %24 = vector.broadcast %23 : vector<16x1xf32> to vector<16x16xf32>
    %25 = arith.mulf %20, %24 : vector<16x16xf32>
    %cst_14 = arith.constant dense<0.000000e+00> : vector<16x32xf32>
    %26 = tpu.matmul %25, %9, %cst_14 {dimension_numbers = #tpu.dot_dimension_numbers<[1], [0], [0], [1], [0, 0, 1, 1], [], []>} : vector<16x16xf32>, vector<16x32xf32>, vector<16x32xf32> -> vector<16x32xf32>
    %c0_15 = arith.constant 0 : index
    %c0_16 = arith.constant 0 : index
    %27 = vector.load %arg6[%c0_15, %c0_16] : memref<32x32xf32, #tpu.memory_space<vmem>>, vector<32x32xf32>
    %cst_17 = arith.constant dense<0.000000e+00> : vector<16x32xf32>
    %28 = tpu.matmul %26, %27, %cst_17 {dimension_numbers = #tpu.dot_dimension_numbers<[1], [0], [0], [1], [0, 0, 1, 1], [], []>} : vector<16x32xf32>, vector<32x32xf32>, vector<16x32xf32> -> vector<16x32xf32>
    %c0_18 = arith.constant 0 : index
    %c0_19 = arith.constant 0 : index
    %29 = vector.load %arg7[%c0_18, %c0_19] : memref<1x32xf32, #tpu.memory_space<vmem>>, vector<1x32xf32>
    %30 = vector.broadcast %29 : vector<1x32xf32> to vector<16x32xf32>
    %31 = arith.addf %28, %30 : vector<16x32xf32>
    %32 = arith.addf %0, %31 : vector<16x32xf32>
    %c0_20 = arith.constant 0 : index
    %c0_21 = arith.constant 0 : index
    %33 = vector.load %arg8[%c0_20, %c0_21] : memref<1x32xf32, #tpu.memory_space<vmem>>, vector<1x32xf32>
    %c0_22 = arith.constant 0 : index
    %c0_23 = arith.constant 0 : index
    %34 = vector.load %arg9[%c0_22, %c0_23] : memref<1x32xf32, #tpu.memory_space<vmem>>, vector<1x32xf32>
    %cst_24 = arith.constant dense<0.000000e+00> : vector<16xf32>
    %35 = vector.multi_reduction <add>, %32, %cst_24 [1] : vector<16x32xf32> to vector<16xf32>
    %36 = vector.shape_cast %35 : vector<16xf32> to vector<16x1xf32>
    %cst_25 = arith.constant 3.200000e+01 : f32
    %37 = vector.broadcast %cst_25 : f32 to vector<16x1xf32>
    %38 = arith.divf %36, %37 : vector<16x1xf32>
    %39 = vector.broadcast %38 : vector<16x1xf32> to vector<16x32xf32>
    %40 = arith.subf %32, %39 : vector<16x32xf32>
    %41 = arith.mulf %40, %40 : vector<16x32xf32>
    %cst_26 = arith.constant dense<0.000000e+00> : vector<16xf32>
    %42 = vector.multi_reduction <add>, %41, %cst_26 [1] : vector<16x32xf32> to vector<16xf32>
    %43 = vector.shape_cast %42 : vector<16xf32> to vector<16x1xf32>
    %cst_27 = arith.constant 3.200000e+01 : f32
    %44 = vector.broadcast %cst_27 : f32 to vector<16x1xf32>
    %45 = arith.divf %43, %44 : vector<16x1xf32>
    %46 = vector.broadcast %38 : vector<16x1xf32> to vector<16x32xf32>
    %47 = arith.subf %32, %46 : vector<16x32xf32>
    %cst_28 = arith.constant 9.99999974E-6 : f32
    %48 = vector.broadcast %cst_28 : f32 to vector<16x1xf32>
    %49 = arith.addf %45, %48 : vector<16x1xf32>
    %50 = math.rsqrt %49 : vector<16x1xf32>
    %51 = vector.broadcast %50 : vector<16x1xf32> to vector<16x32xf32>
    %52 = arith.mulf %47, %51 : vector<16x32xf32>
    %53 = vector.broadcast %33 : vector<1x32xf32> to vector<16x32xf32>
    %54 = arith.mulf %52, %53 : vector<16x32xf32>
    %55 = vector.broadcast %34 : vector<1x32xf32> to vector<16x32xf32>
    %56 = arith.addf %54, %55 : vector<16x32xf32>
    %c0_29 = arith.constant 0 : index
    %c0_30 = arith.constant 0 : index
    %57 = vector.load %arg10[%c0_29, %c0_30] : memref<32x32xf32, #tpu.memory_space<vmem>>, vector<32x32xf32>
    %cst_31 = arith.constant dense<0.000000e+00> : vector<16x32xf32>
    %58 = tpu.matmul %56, %57, %cst_31 {dimension_numbers = #tpu.dot_dimension_numbers<[1], [0], [0], [1], [0, 0, 1, 1], [], []>} : vector<16x32xf32>, vector<32x32xf32>, vector<16x32xf32> -> vector<16x32xf32>
    %c0_32 = arith.constant 0 : index
    %c0_33 = arith.constant 0 : index
    %59 = vector.load %arg11[%c0_32, %c0_33] : memref<1x32xf32, #tpu.memory_space<vmem>>, vector<1x32xf32>
    %60 = vector.broadcast %59 : vector<1x32xf32> to vector<16x32xf32>
    %61 = arith.addf %58, %60 : vector<16x32xf32>
    %c0_34 = arith.constant 0 : index
    %c0_35 = arith.constant 0 : index
    %62 = vector.load %arg12[%c0_34, %c0_35] : memref<32x64xf32, #tpu.memory_space<vmem>>, vector<32x64xf32>
    %cst_36 = arith.constant dense<0.000000e+00> : vector<16x64xf32>
    %63 = tpu.matmul %1, %62, %cst_36 {dimension_numbers = #tpu.dot_dimension_numbers<[1], [0], [0], [1], [0, 0, 1, 1], [], []>} : vector<16x32xf32>, vector<32x64xf32>, vector<16x64xf32> -> vector<16x64xf32>
    %c0_37 = arith.constant 0 : index
    %c0_38 = arith.constant 0 : index
    %64 = vector.load %arg13[%c0_37, %c0_38] : memref<1x64xf32, #tpu.memory_space<vmem>>, vector<1x64xf32>
    %65 = vector.broadcast %64 : vector<1x64xf32> to vector<16x64xf32>
    %66 = arith.addf %63, %65 : vector<16x64xf32>
    %67 = vector.extract_strided_slice %66 {offsets = [0, 0], sizes = [16, 32], strides = [1, 1]} : vector<16x64xf32> to vector<16x32xf32>
    %68 = vector.extract_strided_slice %66 {offsets = [0, 32], sizes = [16, 32], strides = [1, 1]} : vector<16x64xf32> to vector<16x32xf32>
    %c0_39 = arith.constant 0 : index
    %c0_40 = arith.constant 0 : index
    %69 = vector.load %arg3[%c0_39, %c0_40] : memref<16x16xf32, #tpu.memory_space<vmem>>, vector<16x16xf32>
    %cst_41 = arith.constant dense<0.000000e+00> : vector<16x16xf32>
    %70 = tpu.matmul %61, %67, %cst_41 {dimension_numbers = #tpu.dot_dimension_numbers<[1], [1], [0], [0], [0, 0, 1, 0], [], []>} : vector<16x32xf32>, vector<16x32xf32>, vector<16x16xf32> -> vector<16x16xf32>
    %cst_42 = arith.constant 0.000000e+00 : f32
    %71 = vector.broadcast %cst_42 : f32 to vector<16x16xf32>
    %72 = arith.cmpf ogt, %69, %71 : vector<16x16xf32>
    %cst_43 = arith.constant -1.000000e+09 : f32
    %73 = vector.broadcast %cst_43 : f32 to vector<16x16xf32>
    %74 = arith.select %72, %70, %73 : vector<16x16xi1>, vector<16x16xf32>
    %cst_44 = arith.constant dense<0xFF800000> : vector<16xf32>
    %75 = vector.multi_reduction <maximumf>, %74, %cst_44 [1] : vector<16x16xf32> to vector<16xf32>
    %76 = vector.shape_cast %75 : vector<16xf32> to vector<16x1xf32>
    %77 = vector.broadcast %76 : vector<16x1xf32> to vector<16x16xf32>
    %78 = arith.subf %74, %77 : vector<16x16xf32>
    %79 = math.exp %78 : vector<16x16xf32>
    %cst_45 = arith.constant dense<0.000000e+00> : vector<16xf32>
    %80 = vector.multi_reduction <add>, %79, %cst_45 [1] : vector<16x16xf32> to vector<16xf32>
    %81 = vector.shape_cast %80 : vector<16xf32> to vector<16x1xf32>
    %82 = tpu.reciprocal %81 {approx = true} : vector<16x1xf32> -> vector<16x1xf32>
    %83 = vector.broadcast %82 : vector<16x1xf32> to vector<16x16xf32>
    %84 = arith.mulf %79, %83 : vector<16x16xf32>
    %cst_46 = arith.constant dense<0.000000e+00> : vector<16x32xf32>
    %85 = tpu.matmul %84, %68, %cst_46 {dimension_numbers = #tpu.dot_dimension_numbers<[1], [0], [0], [1], [0, 0, 1, 1], [], []>} : vector<16x16xf32>, vector<16x32xf32>, vector<16x32xf32> -> vector<16x32xf32>
    %c0_47 = arith.constant 0 : index
    %c0_48 = arith.constant 0 : index
    %86 = vector.load %arg14[%c0_47, %c0_48] : memref<32x32xf32, #tpu.memory_space<vmem>>, vector<32x32xf32>
    %cst_49 = arith.constant dense<0.000000e+00> : vector<16x32xf32>
    %87 = tpu.matmul %85, %86, %cst_49 {dimension_numbers = #tpu.dot_dimension_numbers<[1], [0], [0], [1], [0, 0, 1, 1], [], []>} : vector<16x32xf32>, vector<32x32xf32>, vector<16x32xf32> -> vector<16x32xf32>
    %c0_50 = arith.constant 0 : index
    %c0_51 = arith.constant 0 : index
    %88 = vector.load %arg15[%c0_50, %c0_51] : memref<1x32xf32, #tpu.memory_space<vmem>>, vector<1x32xf32>
    %89 = vector.broadcast %88 : vector<1x32xf32> to vector<16x32xf32>
    %90 = arith.addf %87, %89 : vector<16x32xf32>
    %91 = arith.addf %56, %90 : vector<16x32xf32>
    %c0_52 = arith.constant 0 : index
    %c0_53 = arith.constant 0 : index
    %92 = vector.load %arg16[%c0_52, %c0_53] : memref<1x32xf32, #tpu.memory_space<vmem>>, vector<1x32xf32>
    %c0_54 = arith.constant 0 : index
    %c0_55 = arith.constant 0 : index
    %93 = vector.load %arg17[%c0_54, %c0_55] : memref<1x32xf32, #tpu.memory_space<vmem>>, vector<1x32xf32>
    %cst_56 = arith.constant dense<0.000000e+00> : vector<16xf32>
    %94 = vector.multi_reduction <add>, %91, %cst_56 [1] : vector<16x32xf32> to vector<16xf32>
    %95 = vector.shape_cast %94 : vector<16xf32> to vector<16x1xf32>
    %cst_57 = arith.constant 3.200000e+01 : f32
    %96 = vector.broadcast %cst_57 : f32 to vector<16x1xf32>
    %97 = arith.divf %95, %96 : vector<16x1xf32>
    %98 = vector.broadcast %97 : vector<16x1xf32> to vector<16x32xf32>
    %99 = arith.subf %91, %98 : vector<16x32xf32>
    %100 = arith.mulf %99, %99 : vector<16x32xf32>
    %cst_58 = arith.constant dense<0.000000e+00> : vector<16xf32>
    %101 = vector.multi_reduction <add>, %100, %cst_58 [1] : vector<16x32xf32> to vector<16xf32>
    %102 = vector.shape_cast %101 : vector<16xf32> to vector<16x1xf32>
    %cst_59 = arith.constant 3.200000e+01 : f32
    %103 = vector.broadcast %cst_59 : f32 to vector<16x1xf32>
    %104 = arith.divf %102, %103 : vector<16x1xf32>
    %105 = vector.broadcast %97 : vector<16x1xf32> to vector<16x32xf32>
    %106 = arith.subf %91, %105 : vector<16x32xf32>
    %cst_60 = arith.constant 9.99999974E-6 : f32
    %107 = vector.broadcast %cst_60 : f32 to vector<16x1xf32>
    %108 = arith.addf %104, %107 : vector<16x1xf32>
    %109 = math.rsqrt %108 : vector<16x1xf32>
    %110 = vector.broadcast %109 : vector<16x1xf32> to vector<16x32xf32>
    %111 = arith.mulf %106, %110 : vector<16x32xf32>
    %112 = vector.broadcast %92 : vector<1x32xf32> to vector<16x32xf32>
    %113 = arith.mulf %111, %112 : vector<16x32xf32>
    %114 = vector.broadcast %93 : vector<1x32xf32> to vector<16x32xf32>
    %115 = arith.addf %113, %114 : vector<16x32xf32>
    %c0_61 = arith.constant 0 : index
    %c0_62 = arith.constant 0 : index
    %116 = vector.load %arg18[%c0_61, %c0_62] : memref<32x64xf32, #tpu.memory_space<vmem>>, vector<32x64xf32>
    %cst_63 = arith.constant dense<0.000000e+00> : vector<16x64xf32>
    %117 = tpu.matmul %115, %116, %cst_63 {dimension_numbers = #tpu.dot_dimension_numbers<[1], [0], [0], [1], [0, 0, 1, 1], [], []>} : vector<16x32xf32>, vector<32x64xf32>, vector<16x64xf32> -> vector<16x64xf32>
    %c0_64 = arith.constant 0 : index
    %c0_65 = arith.constant 0 : index
    %118 = vector.load %arg19[%c0_64, %c0_65] : memref<1x64xf32, #tpu.memory_space<vmem>>, vector<1x64xf32>
    %119 = vector.broadcast %118 : vector<1x64xf32> to vector<16x64xf32>
    %120 = arith.addf %117, %119 : vector<16x64xf32>
    %cst_66 = arith.constant 0.000000e+00 : f32
    %121 = vector.broadcast %cst_66 : f32 to vector<16x64xf32>
    %122 = arith.maximumf %120, %121 : vector<16x64xf32>
    %c0_67 = arith.constant 0 : index
    %c0_68 = arith.constant 0 : index
    %123 = vector.load %arg20[%c0_67, %c0_68] : memref<64x32xf32, #tpu.memory_space<vmem>>, vector<64x32xf32>
    %cst_69 = arith.constant dense<0.000000e+00> : vector<16x32xf32>
    %124 = tpu.matmul %122, %123, %cst_69 {dimension_numbers = #tpu.dot_dimension_numbers<[1], [0], [0], [1], [0, 0, 1, 1], [], []>} : vector<16x64xf32>, vector<64x32xf32>, vector<16x32xf32> -> vector<16x32xf32>
    %c0_70 = arith.constant 0 : index
    %c0_71 = arith.constant 0 : index
    %125 = vector.load %arg21[%c0_70, %c0_71] : memref<1x32xf32, #tpu.memory_space<vmem>>, vector<1x32xf32>
    %126 = vector.broadcast %125 : vector<1x32xf32> to vector<16x32xf32>
    %127 = arith.addf %124, %126 : vector<16x32xf32>
    %128 = arith.addf %115, %127 : vector<16x32xf32>
    %c0_72 = arith.constant 0 : index
    %c0_73 = arith.constant 0 : index
    %129 = vector.load %arg22[%c0_72, %c0_73] : memref<1x32xf32, #tpu.memory_space<vmem>>, vector<1x32xf32>
    %c0_74 = arith.constant 0 : index
    %c0_75 = arith.constant 0 : index
    %130 = vector.load %arg23[%c0_74, %c0_75] : memref<1x32xf32, #tpu.memory_space<vmem>>, vector<1x32xf32>
    %cst_76 = arith.constant dense<0.000000e+00> : vector<16xf32>
    %131 = vector.multi_reduction <add>, %128, %cst_76 [1] : vector<16x32xf32> to vector<16xf32>
    %132 = vector.shape_cast %131 : vector<16xf32> to vector<16x1xf32>
    %cst_77 = arith.constant 3.200000e+01 : f32
    %133 = vector.broadcast %cst_77 : f32 to vector<16x1xf32>
    %134 = arith.divf %132, %133 : vector<16x1xf32>
    %135 = vector.broadcast %134 : vector<16x1xf32> to vector<16x32xf32>
    %136 = arith.subf %128, %135 : vector<16x32xf32>
    %137 = arith.mulf %136, %136 : vector<16x32xf32>
    %cst_78 = arith.constant dense<0.000000e+00> : vector<16xf32>
    %138 = vector.multi_reduction <add>, %137, %cst_78 [1] : vector<16x32xf32> to vector<16xf32>
    %139 = vector.shape_cast %138 : vector<16xf32> to vector<16x1xf32>
    %cst_79 = arith.constant 3.200000e+01 : f32
    %140 = vector.broadcast %cst_79 : f32 to vector<16x1xf32>
    %141 = arith.divf %139, %140 : vector<16x1xf32>
    %142 = vector.broadcast %134 : vector<16x1xf32> to vector<16x32xf32>
    %143 = arith.subf %128, %142 : vector<16x32xf32>
    %cst_80 = arith.constant 9.99999974E-6 : f32
    %144 = vector.broadcast %cst_80 : f32 to vector<16x1xf32>
    %145 = arith.addf %141, %144 : vector<16x1xf32>
    %146 = math.rsqrt %145 : vector<16x1xf32>
    %147 = vector.broadcast %146 : vector<16x1xf32> to vector<16x32xf32>
    %148 = arith.mulf %143, %147 : vector<16x32xf32>
    %149 = vector.broadcast %129 : vector<1x32xf32> to vector<16x32xf32>
    %150 = arith.mulf %148, %149 : vector<16x32xf32>
    %151 = vector.broadcast %130 : vector<1x32xf32> to vector<16x32xf32>
    %152 = arith.addf %150, %151 : vector<16x32xf32>
    %c0_81 = arith.constant 0 : index
    %c0_82 = arith.constant 0 : index
    %153 = vector.load %arg24[%c0_81, %c0_82] : memref<16x32xf32, #tpu.memory_space<vmem>>, vector<16x32xf32>
    tpu.vector_store %arg24[%c0_81, %c0_82], %152 {strides = array<i32>} : memref<16x32xf32, #tpu.memory_space<vmem>>, vector<16x32xf32>,
    return
  }
}

</mosaic_0001>

<llo_original>
// kernel: _lambda_.5
$region0: #{_lambda_.5}
  #allocation0 [shape = 'u32[]', space=smem, size = 0x4, offset = 0x4, fixed_abs, tag = 'smem constant byte address 0x4 - core index']
  #allocation1 [shape = 'u32[72,128]{1,0:T(1,128)}', space=vmem, size = 0x9000, scoped, tag = 'internal scratch']
  %s0 = inlined_call_operand.vmem [shape: f32[16,32], index: 0, kind: input, shape index: {}]
  %s1 = inlined_call_operand.vmem [shape: f32[32,64], index: 1, kind: input, shape index: {}]
  %s2 = inlined_call_operand.vmem [shape: f32[1,64], index: 2, kind: input, shape index: {}]
  %s3 = inlined_call_operand.hbm [shape: f32[16,64], index: 3, kind: output, shape index: {}]
  %s4 = sld [smem:[#allocation0]]
  $region22: #{_lambda_.5} parent=0
    _
  %s6 = ssub.s32 1, %s4
  %s7 = scalar_select 0, %s6, %s4
  $region1: #{_lambda_.5} parent=0
    #allocation2 [shape = 'u8[8192]{0}', space=vmem, size = 0x2000, scoped, tag = 'output window, operand 0, single buffered']
    #allocation3 [shape = 's32[1]{0}', space=sflag, size = 0x4, scoped, tag = 'scoped memory for _lambda_.5']
    %8 = vsyncpa [#allocation3], 0
    // Predicated region
    $region2: #{_lambda_.5} parent=1 // pred_check
      _
    $region3: #{_lambda_.5} parent=1 // pred_check_branch
      %10 = sbr.rel (0) target = $region5
    $region4: #{_lambda_.5} parent=1 // pred_region
      _
    $region5: #{_lambda_.5} parent=1 // pred_fallthru
      _
    // Predicated region
    $region6: #{_lambda_.5} parent=1 // pred_check
      _
    $region7: #{_lambda_.5} parent=1 // pred_check_branch
      %12 = sbr.rel (0) target = $region9
    $region8: #{_lambda_.5} parent=1 // pred_region
      _
    $region9: #{_lambda_.5} parent=1 // pred_fallthru
      _
    // Predicated region
    $region10: #{_lambda_.5} parent=1 // pred_check
      _
    $region11: #{_lambda_.5} parent=1 // pred_check_branch
      %14 = sbr.rel (0) target = $region13
    $region12: #{_lambda_.5} parent=1 // pred_region
      _
    $region13: #{_lambda_.5} parent=1 // pred_fallthru
      _
    %v15 = vld [vmem:[%s0] sm:$0xff]
    %v16 = vld [vmem:[%s0 + $0x8] sm:$0xff]
    %v17 = vld [vmem:[%s1] sm:$0xff]
    %v18 = vld [vmem:[%s1 + $0x8] sm:$0xff]
    %v19 = vld [vmem:[%s1 + $0x10] sm:$0xff]
    %v20 = vld [vmem:[%s1 + $0x18] sm:$0xff]
    %v21 = vld [vmem:[%s2] sm:$0x1]
    %v23 = vperm.slane %v21, 0
    %vm25 = vcmask 261120
    %v27 = vsel %vm25, %v15, 0
    %v30 = vsel %vm25, %v16, 0
    %32 = vmatpush.msra.mxu0 0.0
    %33 = vmatpush.msra.mxu0 0.0
    %34 = vmatpush.msra.mxu0 0.0
    %35 = vmatpush.msra.mxu0 0.0
    %36 = vmatpush.msra.mxu0 0.0
    %37 = vmatpush.msra.mxu0 0.0
    %38 = vmatpush.msra.mxu0 0.0
    %39 = vmatpush.msra.mxu0 0.0
    %40 = vmatpush.msra.mxu0 0.0
    %41 = vmatpush.msra.mxu0 0.0
    %42 = vmatpush.msra.mxu0 0.0
    %43 = vmatpush.msra.mxu0 0.0
    %44 = vmatpush.msra.mxu0 %v20
    %45 = vmatpush.msra.mxu0 %v19
    %46 = vmatpush.msra.mxu0 %v18
    %47 = vmatpush.msra.mxu0 %v17
    %48 = vmatmul.f32.gmra.mxu0 %v27
    %v49 = vpop.f32.mrf.mxu0
    %v50 = vadd.f32 %v23, %v49
    %51 = vmatmul.f32.gmra.mxu0 %v30
    %v52 = vpop.f32.mrf.mxu0
    %v53 = vadd.f32 %v23, %v52
    %54 = vdwg.mxu0
    %vm55 = vcmask 523264
    %v56 = vsel %vm55, %v50, -inf
    %57 = vmax.xlane.f32.xlu0 %v56
    %v58 = vpop.xlane.xlu0 %57
    %v59 = vsel %vm55, %v53, -inf
    %60 = vmax.xlane.f32.xlu0 %v59
    %v61 = vpop.xlane.xlu0 %60
    %v62 = vsub.f32 %v50, %v58
    %v63 = vsub.f32 %v53, %v61
    %v64 = vmul.f32 %v62, 1.442695
    %v65 = vpow.pop %v64
    %v66 = vmul.f32 %v63, 1.442695
    %v67 = vpow.pop %v66
    %v68 = vsel %vm55, %v65, 0.0
    %69 = vadd.xlane.f32.xlu0 %v68
    %v70 = vpop.xlane.xlu0 %69
    %v71 = vsel %vm55, %v67, 0.0
    %72 = vadd.xlane.f32.xlu0 %v71
    %v73 = vpop.xlane.xlu0 %72
    %v74 = vlog2.pop %v70
    %v75 = vmul.f32 %v74, 0.6931472
    %v76 = vlog2.pop %v73
    %v77 = vmul.f32 %v76, 0.6931472
    %v78 = vsub.f32 %v62, %v75
    %v79 = vsub.f32 %v63, %v77
    %80 = vst.msk [vmem:[#allocation2] sm:$0xff] %vm55, %v78
    %81 = vst.msk [vmem:[#allocation2 + $0x8] sm:$0xff] %vm55, %v79
    // Predicated region
    $region14: #{_lambda_.5} parent=1 // pred_check
      _
    $region15: #{_lambda_.5} parent=1 // pred_check_branch
      %83 = sbr.rel (0) target = $region17
    $region16: #{_lambda_.5} parent=1 // pred_region
      %85 = vsyncadd [#allocation3], 0
      %s86 = sshll.u32 [#allocation2], 4
      %s87 = int_to_ptr.vmem [resolvable:$true] %s86
      %s88 = sshll.u32 %s3, 4
      %s89 = int_to_ptr.hbm [resolvable:$true] %s88
      %94 = dma.vmem_to_hbm [thread:$0]  %s87, 256, %s89, [#allocation3], 128, 128, 8
    $region17: #{_lambda_.5} parent=1 // pred_fallthru
      _
    // Predicated region
    $region18: #{_lambda_.5} parent=1 // pred_check
      _
    $region19: #{_lambda_.5} parent=1 // pred_check_branch
      %96 = sbr.rel (0) target = $region21
    $region20: #{_lambda_.5} parent=1 // pred_region
      %98 = dma.done [#allocation3], 256
    $region21: #{_lambda_.5} parent=1 // pred_fallthru
      _
    %99 = vsyncpa [#allocation3], 1

// kernel: _lambda_.3
$region0: #{_lambda_.3}
  #allocation0 [shape = 'u32[]', space=smem, size = 0x4, offset = 0x4, fixed_abs, tag = 'smem constant byte address 0x4 - core index']
  #allocation1 [shape = 'u32[72,128]{1,0:T(1,128)}', space=vmem, size = 0x9000, scoped, tag = 'internal scratch']
  %s0 = inlined_call_operand.vmem [shape: f32[16,32], index: 0, kind: input, shape index: {}]
  %s1 = inlined_call_operand.vmem [shape: f32[16,16], index: 1, kind: input, shape index: {}]
  %s2 = inlined_call_operand.vmem [shape: f32[32,96], index: 2, kind: input, shape index: {}]
  %s3 = inlined_call_operand.vmem [shape: f32[1,96], index: 3, kind: input, shape index: {}]
  %s4 = inlined_call_operand.vmem [shape: f32[32,32], index: 4, kind: input, shape index: {}]
  %s5 = inlined_call_operand.vmem [shape: f32[1,32], index: 5, kind: input, shape index: {}]
  %s6 = inlined_call_operand.vmem [shape: f32[1,32], index: 6, kind: input, shape index: {}]
  %s7 = inlined_call_operand.vmem [shape: f32[1,32], index: 7, kind: input, shape index: {}]
  %s8 = inlined_call_operand.vmem [shape: f32[32,64], index: 8, kind: input, shape index: {}]
  %s9 = inlined_call_operand.vmem [shape: f32[1,64], index: 9, kind: input, shape index: {}]
  %s10 = inlined_call_operand.vmem [shape: f32[64,32], index: 10, kind: input, shape index: {}]
  %s11 = inlined_call_operand.vmem [shape: f32[1,32], index: 11, kind: input, shape index: {}]
  %s12 = inlined_call_operand.vmem [shape: f32[1,32], index: 12, kind: input, shape index: {}]
  %s13 = inlined_call_operand.vmem [shape: f32[1,32], index: 13, kind: input, shape index: {}]
  %s14 = inlined_call_operand.vmem [shape: f32[16,32], index: 14, kind: output, shape index: {}]
  %s15 = sld [smem:[#allocation0]]
  $region66: #{_lambda_.3} parent=0
    _
  %s17 = ssub.s32 1, %s15
  %s18 = scalar_select 0, %s17, %s15
  // Predicated region
  $region2: #{_lambda_.3} parent=0 // pred_check
    _
  $region3: #{_lambda_.3} parent=0 // pred_check_branch
    %20 = sbr.rel (0) target = $region5
  $region4: #{_lambda_.3} parent=0 // pred_region
    _
  $region5: #{_lambda_.3} parent=0 // pred_fallthru
    _
  // Predicated region
  $region6: #{_lambda_.3} parent=0 // pred_check
    _
  $region7: #{_lambda_.3} parent=0 // pred_check_branch
    %22 = sbr.rel (0) target = $region9
  $region8: #{_lambda_.3} parent=0 // pred_region
    _
  $region9: #{_lambda_.3} parent=0 // pred_fallthru
    _
  // Predicated region
  $region10: #{_lambda_.3} parent=0 // pred_check
    _
  $region11: #{_lambda_.3} parent=0 // pred_check_branch
    %24 = sbr.rel (0) target = $region13
  $region12: #{_lambda_.3} parent=0 // pred_region
    _
  $region13: #{_lambda_.3} parent=0 // pred_fallthru
    _
  // Predicated region
  $region14: #{_lambda_.3} parent=0 // pred_check
    _
  $region15: #{_lambda_.3} parent=0 // pred_check_branch
    %26 = sbr.rel (0) target = $region17
  $region16: #{_lambda_.3} parent=0 // pred_region
    _
  $region17: #{_lambda_.3} parent=0 // pred_fallthru
    _
  // Predicated region
  $region18: #{_lambda_.3} parent=0 // pred_check
    _
  $region19: #{_lambda_.3} parent=0 // pred_check_branch
    %28 = sbr.rel (0) target = $region21
  $region20: #{_lambda_.3} parent=0 // pred_region
    _
  $region21: #{_lambda_.3} parent=0 // pred_fallthru
    _
  // Predicated region
  $region22: #{_lambda_.3} parent=0 // pred_check
    _
  $region23: #{_lambda_.3} parent=0 // pred_check_branch
    %30 = sbr.rel (0) target = $region25
  $region24: #{_lambda_.3} parent=0 // pred_region
    _
  $region25: #{_lambda_.3} parent=0 // pred_fallthru
    _
  // Predicated region
  $region26: #{_lambda_.3} parent=0 // pred_check
    _
  $region27: #{_lambda_.3} parent=0 // pred_check_branch
    %32 = sbr.rel (0) target = $region29
  $region28: #{_lambda_.3} parent=0 // pred_region
    _
  $region29: #{_lambda_.3} parent=0 // pred_fallthru
    _
  // Predicated region
  $region30: #{_lambda_.3} parent=0 // pred_check
    _
  $region31: #{_lambda_.3} parent=0 // pred_check_branch
    %34 = sbr.rel (0) target = $region33
  $region32: #{_lambda_.3} parent=0 // pred_region
    _
  $region33: #{_lambda_.3} parent=0 // pred_fallthru
    _
  // Predicated region
  $region34: #{_lambda_.3} parent=0 // pred_check
    _
  $region35: #{_lambda_.3} parent=0 // pred_check_branch
    %36 = sbr.rel (0) target = $region37
  $region36: #{_lambda_.3} parent=0 // pred_region
    _
  $region37: #{_lambda_.3} parent=0 // pred_fallthru
    _
  // Predicated region
  $region38: #{_lambda_.3} parent=0 // pred_check
    _
  $region39: #{_lambda_.3} parent=0 // pred_check_branch
    %38 = sbr.rel (0) target = $region41
  $region40: #{_lambda_.3} parent=0 // pred_region
    _
  $region41: #{_lambda_.3} parent=0 // pred_fallthru
    _
  // Predicated region
  $region42: #{_lambda_.3} parent=0 // pred_check
    _
  $region43: #{_lambda_.3} parent=0 // pred_check_branch
    %40 = sbr.rel (0) target = $region45
  $region44: #{_lambda_.3} parent=0 // pred_region
    _
  $region45: #{_lambda_.3} parent=0 // pred_fallthru
    _
  // Predicated region
  $region46: #{_lambda_.3} parent=0 // pred_check
    _
  $region47: #{_lambda_.3} parent=0 // pred_check_branch
    %42 = sbr.rel (0) target = $region49
  $region48: #{_lambda_.3} parent=0 // pred_region
    _
  $region49: #{_lambda_.3} parent=0 // pred_fallthru
    _
  // Predicated region
  $region50: #{_lambda_.3} parent=0 // pred_check
    _
  $region51: #{_lambda_.3} parent=0 // pred_check_branch
    %44 = sbr.rel (0) target = $region53
  $region52: #{_lambda_.3} parent=0 // pred_region
    _
  $region53: #{_lambda_.3} parent=0 // pred_fallthru
    _
  // Predicated region
  $region54: #{_lambda_.3} parent=0 // pred_check
    _
  $region55: #{_lambda_.3} parent=0 // pred_check_branch
    %46 = sbr.rel (0) target = $region57
  $region56: #{_lambda_.3} parent=0 // pred_region
    _
  $region57: #{_lambda_.3} parent=0 // pred_fallthru
    _
  %v47 = vld [vmem:[%s0] sm:$0xff]
  %v48 = vld [vmem:[%s0 + $0x8] sm:$0xff]
  %v49 = vld [vmem:[%s2] sm:$0xff]
  %v50 = vld [vmem:[%s2 + $0x8] sm:$0xff]
  %v51 = vld [vmem:[%s2 + $0x10] sm:$0xff]
  %v52 = vld [vmem:[%s2 + $0x18] sm:$0xff]
  %v53 = vld [vmem:[%s3] sm:$0x1]
  %v55 = vperm.slane %v53, 0
  %vm57 = vcmask 261120
  %v59 = vsel %vm57, %v47, 0
  %v62 = vsel %vm57, %v48, 0
  %64 = vmatpush.msra.mxu0 0.0
  %65 = vmatpush.msra.mxu0 0.0
  %66 = vmatpush.msra.mxu0 0.0
  %67 = vmatpush.msra.mxu0 0.0
  %68 = vmatpush.msra.mxu0 0.0
  %69 = vmatpush.msra.mxu0 0.0
  %70 = vmatpush.msra.mxu0 0.0
  %71 = vmatpush.msra.mxu0 0.0
  %72 = vmatpush.msra.mxu0 0.0
  %73 = vmatpush.msra.mxu0 0.0
  %74 = vmatpush.msra.mxu0 0.0
  %75 = vmatpush.msra.mxu0 0.0
  %76 = vmatpush.msra.mxu0 %v52
  %77 = vmatpush.msra.mxu0 %v51
  %78 = vmatpush.msra.mxu0 %v50
  %79 = vmatpush.msra.mxu0 %v49
  %80 = vmatmul.f32.gmra.mxu0 %v59
  %v81 = vpop.f32.mrf.mxu0
  %v82 = vadd.f32 %v55, %v81
  %83 = vmatmul.f32.gmra.mxu0 %v62
  %v84 = vpop.f32.mrf.mxu0
  %v85 = vadd.f32 %v55, %v84
  %86 = vdwg.mxu0
  %v87 = vld [vmem:[%s1] sm:$0xff]
  %v88 = vld [vmem:[%s1 + $0x8] sm:$0xff]
  %91 = vrot.lane.b32.xlu0 %v82, 96
  %v92 = vpop.permute.xlu0 %91
  %93 = vrot.lane.b32.xlu0 %v85, 96
  %v94 = vpop.permute.xlu0 %93
  %v95 = vsel %vm57, %v82, 0
  %v97 = vsel %vm57, %v85, 0
  %v99 = vsel %vm57, %v92, 0
  %v101 = vsel %vm57, %v94, 0
  %103 = vmatpush.xpose.msra.mxu0 0.0
  %104 = vmatpush.xpose.msra.mxu0 0.0
  %105 = vmatpush.xpose.msra.mxu0 0.0
  %106 = vmatpush.xpose.msra.mxu0 0.0
  %107 = vmatpush.xpose.msra.mxu0 0.0
  %108 = vmatpush.xpose.msra.mxu0 0.0
  %109 = vmatpush.xpose.msra.mxu0 0.0
  %110 = vmatpush.xpose.msra.mxu0 0.0
  %111 = vmatpush.xpose.msra.mxu0 0.0
  %112 = vmatpush.xpose.msra.mxu0 0.0
  %113 = vmatpush.xpose.msra.mxu0 0.0
  %114 = vmatpush.xpose.msra.mxu0 0.0
  %115 = vmatpush.xpose.msra.mxu0 0.0
  %116 = vmatpush.xpose.msra.mxu0 0.0
  %117 = vmatpush.xpose.msra.mxu0 %v101
  %118 = vmatpush.xpose.msra.mxu0 %v99
  %119 = vmatmul.f32.gmra.mxu0 %v95
  %v120 = vpop.f32.mrf.mxu0
  %v121 = vadd.f32 0.0, %v120
  %122 = vmatmul.f32.gmra.mxu0 %v97
  %v123 = vpop.f32.mrf.mxu0
  %v124 = vadd.f32 0.0, %v123
  %125 = vdwg.mxu0
  %vm126 = vcmp.gt.f32.partialorder %v87, 0.0
  %vm127 = vcmp.gt.f32.partialorder %v88, 0.0
  %v128 = vsel %vm126, %v121, -1e+09
  %v129 = vsel %vm127, %v124, -1e+09
  %vm130 = vcmask 130048
  %v131 = vsel %vm130, %v128, -inf
  %132 = vmax.xlane.f32.xlu0 %v131
  %v133 = vpop.xlane.xlu0 %132
  %v134 = vsel %vm130, %v129, -inf
  %135 = vmax.xlane.f32.xlu0 %v134
  %v136 = vpop.xlane.xlu0 %135
  %v137 = vsub.f32 %v128, %v133
  %v138 = vsub.f32 %v129, %v136
  %v139 = vmul.f32 %v137, 1.442695
  %v140 = vpow.pop %v139
  %v141 = vmul.f32 %v138, 1.442695
  %v142 = vpow.pop %v141
  %v143 = vsel %vm130, %v140, 0.0
  %144 = vadd.xlane.f32.xlu0 %v143
  %v145 = vpop.xlane.xlu0 %144
  %v146 = vsel %vm130, %v142, 0.0
  %147 = vadd.xlane.f32.xlu0 %v146
  %v148 = vpop.xlane.xlu0 %147
  %v149 = vrcp.pop %v145
  %v150 = vrcp.pop %v148
  %v151 = vmul.f32 %v140, %v149
  %v152 = vmul.f32 %v142, %v150
  %153 = vrot.lane.b32.xlu0 %v82, 64
  %v154 = vpop.permute.xlu0 %153
  %155 = vrot.lane.b32.xlu0 %v85, 64
  %v156 = vpop.permute.xlu0 %155
  %v160 = vsel %vm130, %v151, 0
  %v163 = vsel %vm130, %v152, 0
  %165 = vmatpush.msra.mxu0 0.0
  %166 = vmatpush.msra.mxu0 0.0
  %167 = vmatpush.msra.mxu0 0.0
  %168 = vmatpush.msra.mxu0 0.0
  %169 = vmatpush.msra.mxu0 0.0
  %170 = vmatpush.msra.mxu0 0.0
  %171 = vmatpush.msra.mxu0 0.0
  %172 = vmatpush.msra.mxu0 0.0
  %173 = vmatpush.msra.mxu0 0.0
  %174 = vmatpush.msra.mxu0 0.0
  %175 = vmatpush.msra.mxu0 0.0
  %176 = vmatpush.msra.mxu0 0.0
  %177 = vmatpush.msra.mxu0 0.0
  %178 = vmatpush.msra.mxu0 0.0
  %179 = vmatpush.msra.mxu0 %v156
  %180 = vmatpush.msra.mxu0 %v154
  %181 = vmatmul.f32.gmra.mxu0 %v160
  %v182 = vpop.f32.mrf.mxu0
  %v183 = vadd.f32 0.0, %v182
  %184 = vmatmul.f32.gmra.mxu0 %v163
  %v185 = vpop.f32.mrf.mxu0
  %v186 = vadd.f32 0.0, %v185
  %187 = vdwg.mxu0
  %v188 = vld [vmem:[%s4] sm:$0xff]
  %v189 = vld [vmem:[%s4 + $0x8] sm:$0xff]
  %v190 = vld [vmem:[%s4 + $0x10] sm:$0xff]
  %v191 = vld [vmem:[%s4 + $0x18] sm:$0xff]
  %v192 = vld [vmem:[%s5] sm:$0x1]
  %v194 = vperm.slane %v192, 0
  %v197 = vsel %vm57, %v183, 0
  %v200 = vsel %vm57, %v186, 0
  %202 = vmatpush.msra.mxu0 0.0
  %203 = vmatpush.msra.mxu0 0.0
  %204 = vmatpush.msra.mxu0 0.0
  %205 = vmatpush.msra.mxu0 0.0
  %206 = vmatpush.msra.mxu0 0.0
  %207 = vmatpush.msra.mxu0 0.0
  %208 = vmatpush.msra.mxu0 0.0
  %209 = vmatpush.msra.mxu0 0.0
  %210 = vmatpush.msra.mxu0 0.0
  %211 = vmatpush.msra.mxu0 0.0
  %212 = vmatpush.msra.mxu0 0.0
  %213 = vmatpush.msra.mxu0 0.0
  %214 = vmatpush.msra.mxu0 %v191
  %215 = vmatpush.msra.mxu0 %v190
  %216 = vmatpush.msra.mxu0 %v189
  %217 = vmatpush.msra.mxu0 %v188
  %218 = vmatmul.f32.gmra.mxu0 %v197
  %v219 = vpop.f32.mrf.mxu0
  %v220 = vadd.f32 %v194, %v219
  %221 = vmatmul.f32.gmra.mxu0 %v200
  %v222 = vpop.f32.mrf.mxu0
  %v223 = vadd.f32 %v194, %v222
  %224 = vdwg.mxu0
  %v225 = vadd.f32 %v47, %v220
  %v226 = vadd.f32 %v48, %v223
  %v227 = vld [vmem:[%s6] sm:$0x1]
  %v228 = vld [vmem:[%s7] sm:$0x1]
  %v229 = vsel %vm57, %v225, 0.0
  %230 = vadd.xlane.f32.xlu0 %v229
  %v231 = vpop.xlane.xlu0 %230
  %v232 = vsel %vm57, %v226, 0.0
  %233 = vadd.xlane.f32.xlu0 %v232
  %v234 = vpop.xlane.xlu0 %233
  %v235 = vrcp.pop 32.0
  %v236 = vmul.f32 32.0, %v235
  %v237 = vsub.f32 1.0, %v236
  %v238 = vmul.f32 %v235, %v237
  %v239 = vadd.f32 %v235, %v238
  %vm240 = vweird.f32 %v235
  %v241 = vsel %vm240, %v235, %v239
  %v242 = vmul.f32 %v231, %v241
  %v243 = vmul.f32 %v234, %v241
  %v244 = vsub.f32 %v225, %v242
  %v245 = vsub.f32 %v226, %v243
  %v246 = vmul.f32 %v244, %v244
  %v247 = vmul.f32 %v245, %v245
  %v248 = vsel %vm57, %v246, 0.0
  %249 = vadd.xlane.f32.xlu0 %v248
  %v250 = vpop.xlane.xlu0 %249
  %v251 = vsel %vm57, %v247, 0.0
  %252 = vadd.xlane.f32.xlu0 %v251
  %v253 = vpop.xlane.xlu0 %252
  %v254 = vmul.f32 %v250, %v241
  %v255 = vmul.f32 %v253, %v241
  %v256 = vadd.f32 %v254, 1e-05
  %v257 = vadd.f32 %v255, 1e-05
  %v258 = vrsqrt.pop %v256
  %v259 = vmul.f32 %v258, %v256
  %v260 = vmul.f32 %v259, %v258
  %v261 = vmul.f32 0.5, %v260
  %v262 = vsub.f32 1.5, %v261
  %v263 = vmul.f32 %v258, %v262
  %vm264 = vweird.f32 %v256
  %vm265 = vweird.f32 %v258
  %vm266 = vmor %vm264, %vm265
  %v267 = vsel %vm266, %v258, %v263
  %v268 = vrsqrt.pop %v257
  %v269 = vmul.f32 %v268, %v257
  %v270 = vmul.f32 %v269, %v268
  %v271 = vmul.f32 0.5, %v270
  %v272 = vsub.f32 1.5, %v271
  %v273 = vmul.f32 %v268, %v272
  %vm274 = vweird.f32 %v257
  %vm275 = vweird.f32 %v268
  %vm276 = vmor %vm274, %vm275
  %v277 = vsel %vm276, %v268, %v273
  %v278 = vmul.f32 %v244, %v267
  %v279 = vmul.f32 %v245, %v277
  %v281 = vperm.slane %v227, 0
  %v283 = vmul.f32 %v278, %v281
  %v284 = vmul.f32 %v279, %v281
  %v286 = vperm.slane %v228, 0
  %v288 = vadd.f32 %v283, %v286
  %v289 = vadd.f32 %v284, %v286
  %v290 = vld [vmem:[%s8] sm:$0xff]
  %v291 = vld [vmem:[%s8 + $0x8] sm:$0xff]
  %v292 = vld [vmem:[%s8 + $0x10] sm:$0xff]
  %v293 = vld [vmem:[%s8 + $0x18] sm:$0xff]
  %v294 = vld [vmem:[%s9] sm:$0x1]
  %v296 = vperm.slane %v294, 0
  %v299 = vsel %vm57, %v288, 0
  %v302 = vsel %vm57, %v289, 0
  %304 = vmatpush.msra.mxu0 0.0
  %305 = vmatpush.msra.mxu0 0.0
  %306 = vmatpush.msra.mxu0 0.0
  %307 = vmatpush.msra.mxu0 0.0
  %308 = vmatpush.msra.mxu0 0.0
  %309 = vmatpush.msra.mxu0 0.0
  %310 = vmatpush.msra.mxu0 0.0
  %311 = vmatpush.msra.mxu0 0.0
  %312 = vmatpush.msra.mxu0 0.0
  %313 = vmatpush.msra.mxu0 0.0
  %314 = vmatpush.msra.mxu0 0.0
  %315 = vmatpush.msra.mxu0 0.0
  %316 = vmatpush.msra.mxu0 %v293
  %317 = vmatpush.msra.mxu0 %v292
  %318 = vmatpush.msra.mxu0 %v291
  %319 = vmatpush.msra.mxu0 %v290
  %320 = vmatmul.f32.gmra.mxu0 %v299
  %v321 = vpop.f32.mrf.mxu0
  %v322 = vadd.f32 %v296, %v321
  %323 = vmatmul.f32.gmra.mxu0 %v302
  %v324 = vpop.f32.mrf.mxu0
  %v325 = vadd.f32 %v296, %v324
  %326 = vdwg.mxu0
  %v327 = vmax.f32 %v322, 0.0
  %v328 = vmax.f32 %v325, 0.0
  %v329 = vld [vmem:[%s10] sm:$0xff]
  %v330 = vld [vmem:[%s10 + $0x8] sm:$0xff]
  %v331 = vld [vmem:[%s10 + $0x10] sm:$0xff]
  %v332 = vld [vmem:[%s10 + $0x18] sm:$0xff]
  %v333 = vld [vmem:[%s10 + $0x20] sm:$0xff]
  %v334 = vld [vmem:[%s10 + $0x28] sm:$0xff]
  %v335 = vld [vmem:[%s10 + $0x30] sm:$0xff]
  %v336 = vld [vmem:[%s10 + $0x38] sm:$0xff]
  %v337 = vld [vmem:[%s11] sm:$0x1]
  %v339 = vperm.slane %v337, 0
  %vm341 = vcmask 523264
  %v343 = vsel %vm341, %v327, 0
  %v346 = vsel %vm341, %v328, 0
  %348 = vmatpush.msra.mxu0 0.0
  %349 = vmatpush.msra.mxu0 0.0
  %350 = vmatpush.msra.mxu0 0.0
  %351 = vmatpush.msra.mxu0 0.0
  %352 = vmatpush.msra.mxu0 0.0
  %353 = vmatpush.msra.mxu0 0.0
  %354 = vmatpush.msra.mxu0 0.0
  %355 = vmatpush.msra.mxu0 0.0
  %356 = vmatpush.msra.mxu0 %v336
  %357 = vmatpush.msra.mxu0 %v335
  %358 = vmatpush.msra.mxu0 %v334
  %359 = vmatpush.msra.mxu0 %v333
  %360 = vmatpush.msra.mxu0 %v332
  %361 = vmatpush.msra.mxu0 %v331
  %362 = vmatpush.msra.mxu0 %v330
  %363 = vmatpush.msra.mxu0 %v329
  %364 = vmatmul.f32.gmra.mxu0 %v343
  %v365 = vpop.f32.mrf.mxu0
  %v366 = vadd.f32 %v339, %v365
  %367 = vmatmul.f32.gmra.mxu0 %v346
  %v368 = vpop.f32.mrf.mxu0
  %v369 = vadd.f32 %v339, %v368
  %370 = vdwg.mxu0
  %v371 = vadd.f32 %v288, %v366
  %v372 = vadd.f32 %v289, %v369
  %v373 = vld [vmem:[%s12] sm:$0x1]
  %v374 = vld [vmem:[%s13] sm:$0x1]
  %v375 = vsel %vm57, %v371, 0.0
  %376 = vadd.xlane.f32.xlu0 %v375
  %v377 = vpop.xlane.xlu0 %376
  %v378 = vsel %vm57, %v372, 0.0
  %379 = vadd.xlane.f32.xlu0 %v378
  %v380 = vpop.xlane.xlu0 %379
  %v381 = vmul.f32 %v377, %v241
  %v382 = vmul.f32 %v380, %v241
  %v383 = vsub.f32 %v371, %v381
  %v384 = vsub.f32 %v372, %v382
  %v385 = vmul.f32 %v383, %v383
  %v386 = vmul.f32 %v384, %v384
  %v387 = vsel %vm57, %v385, 0.0
  %388 = vadd.xlane.f32.xlu0 %v387
  %v389 = vpop.xlane.xlu0 %388
  %v390 = vsel %vm57, %v386, 0.0
  %391 = vadd.xlane.f32.xlu0 %v390
  %v392 = vpop.xlane.xlu0 %391
  %v393 = vmul.f32 %v389, %v241
  %v394 = vmul.f32 %v392, %v241
  %v395 = vadd.f32 %v393, 1e-05
  %v396 = vadd.f32 %v394, 1e-05
  %v397 = vrsqrt.pop %v395
  %v398 = vmul.f32 %v397, %v395
  %v399 = vmul.f32 %v398, %v397
  %v400 = vmul.f32 0.5, %v399
  %v401 = vsub.f32 1.5, %v400
  %v402 = vmul.f32 %v397, %v401
  %vm403 = vweird.f32 %v395
  %vm404 = vweird.f32 %v397
  %vm405 = vmor %vm403, %vm404
  %v406 = vsel %vm405, %v397, %v402
  %v407 = vrsqrt.pop %v396
  %v408 = vmul.f32 %v407, %v396
  %v409 = vmul.f32 %v408, %v407
  %v410 = vmul.f32 0.5, %v409
  %v411 = vsub.f32 1.5, %v410
  %v412 = vmul.f32 %v407, %v411
  %vm413 = vweird.f32 %v396
  %vm414 = vweird.f32 %v407
  %vm415 = vmor %vm413, %vm414
  %v416 = vsel %vm415, %v407, %v412
  %v417 = vmul.f32 %v383, %v406
  %v418 = vmul.f32 %v384, %v416
  %v420 = vperm.slane %v373, 0
  %v422 = vmul.f32 %v417, %v420
  %v423 = vmul.f32 %v418, %v420
  %v425 = vperm.slane %v374, 0
  %v427 = vadd.f32 %v422, %v425
  %v428 = vadd.f32 %v423, %v425
  %429 = vst.msk [vmem:[%s14] sm:$0xff] %vm57, %v427
  %430 = vst.msk [vmem:[%s14 + $0x8] sm:$0xff] %vm57, %v428
  // Predicated region
  $region58: #{_lambda_.3} parent=0 // pred_check
    _
  $region59: #{_lambda_.3} parent=0 // pred_check_branch
    %432 = sbr.rel (0) target = $region61
  $region60: #{_lambda_.3} parent=0 // pred_region
    _
  $region61: #{_lambda_.3} parent=0 // pred_fallthru
    _
  // Predicated region
  $region62: #{_lambda_.3} parent=0 // pred_check
    _
  $region63: #{_lambda_.3} parent=0 // pred_check_branch
    %434 = sbr.rel (0) target = $region65
  $region64: #{_lambda_.3} parent=0 // pred_region
    _
  $region65: #{_lambda_.3} parent=0 // pred_fallthru
    _

// kernel: _lambda_.4
$region0: #{_lambda_.4}
  #allocation0 [shape = 'u32[]', space=smem, size = 0x4, offset = 0x4, fixed_abs, tag = 'smem constant byte address 0x4 - core index']
  #allocation1 [shape = 'u32[72,128]{1,0:T(1,128)}', space=vmem, size = 0x9000, scoped, tag = 'internal scratch']
  %s0 = inlined_call_operand.vmem [shape: f32[16,32], index: 0, kind: input, shape index: {}]
  %s1 = inlined_call_operand.vmem [shape: f32[16,32], index: 1, kind: input, shape index: {}]
  %s2 = inlined_call_operand.vmem [shape: f32[16,16], index: 2, kind: input, shape index: {}]
  %s3 = inlined_call_operand.vmem [shape: f32[16,16], index: 3, kind: input, shape index: {}]
  %s4 = inlined_call_operand.vmem [shape: f32[32,96], index: 4, kind: input, shape index: {}]
  %s5 = inlined_call_operand.vmem [shape: f32[1,96], index: 5, kind: input, shape index: {}]
  %s6 = inlined_call_operand.vmem [shape: f32[32,32], index: 6, kind: input, shape index: {}]
  %s7 = inlined_call_operand.vmem [shape: f32[1,32], index: 7, kind: input, shape index: {}]
  %s8 = inlined_call_operand.vmem [shape: f32[1,32], index: 8, kind: input, shape index: {}]
  %s9 = inlined_call_operand.vmem [shape: f32[1,32], index: 9, kind: input, shape index: {}]
  %s10 = inlined_call_operand.vmem [shape: f32[32,32], index: 10, kind: input, shape index: {}]
  %s11 = inlined_call_operand.vmem [shape: f32[1,32], index: 11, kind: input, shape index: {}]
  %s12 = inlined_call_operand.vmem [shape: f32[32,64], index: 12, kind: input, shape index: {}]
  %s13 = inlined_call_operand.vmem [shape: f32[1,64], index: 13, kind: input, shape index: {}]
  %s14 = inlined_call_operand.vmem [shape: f32[32,32], index: 14, kind: input, shape index: {}]
  %s15 = inlined_call_operand.vmem [shape: f32[1,32], index: 15, kind: input, shape index: {}]
  %s16 = inlined_call_operand.vmem [shape: f32[1,32], index: 16, kind: input, shape index: {}]
  %s17 = inlined_call_operand.vmem [shape: f32[1,32], index: 17, kind: input, shape index: {}]
  %s18 = inlined_call_operand.vmem [shape: f32[32,64], index: 18, kind: input, shape index: {}]
  %s19 = inlined_call_operand.vmem [shape: f32[1,64], index: 19, kind: input, shape index: {}]
  %s20 = inlined_call_operand.vmem [shape: f32[64,32], index: 20, kind: input, shape index: {}]
  %s21 = inlined_call_operand.vmem [shape: f32[1,32], index: 21, kind: input, shape index: {}]
  %s22 = inlined_call_operand.vmem [shape: f32[1,32], index: 22, kind: input, shape index: {}]
  %s23 = inlined_call_operand.vmem [shape: f32[1,32], index: 23, kind: input, shape index: {}]
  %s24 = inlined_call_operand.vmem [shape: f32[16,32], index: 24, kind: output, shape index: {}]
  %s25 = sld [smem:[#allocation0]]
  $region106: #{_lambda_.4} parent=0
    _
  %s27 = ssub.s32 1, %s25
  %s28 = scalar_select 0, %s27, %s25
  // Predicated region
  $region2: #{_lambda_.4} parent=0 // pred_check
    _
  $region3: #{_lambda_.4} parent=0 // pred_check_branch
    %30 = sbr.rel (0) target = $region5
  $region4: #{_lambda_.4} parent=0 // pred_region
    _
  $region5: #{_lambda_.4} parent=0 // pred_fallthru
    _
  // Predicated region
  $region6: #{_lambda_.4} parent=0 // pred_check
    _
  $region7: #{_lambda_.4} parent=0 // pred_check_branch
    %32 = sbr.rel (0) target = $region9
  $region8: #{_lambda_.4} parent=0 // pred_region
    _
  $region9: #{_lambda_.4} parent=0 // pred_fallthru
    _
  // Predicated region
  $region10: #{_lambda_.4} parent=0 // pred_check
    _
  $region11: #{_lambda_.4} parent=0 // pred_check_branch
    %34 = sbr.rel (0) target = $region13
  $region12: #{_lambda_.4} parent=0 // pred_region
    _
  $region13: #{_lambda_.4} parent=0 // pred_fallthru
    _
  // Predicated region
  $region14: #{_lambda_.4} parent=0 // pred_check
    _
  $region15: #{_lambda_.4} parent=0 // pred_check_branch
    %36 = sbr.rel (0) target = $region17
  $region16: #{_lambda_.4} parent=0 // pred_region
    _
  $region17: #{_lambda_.4} parent=0 // pred_fallthru
    _
  // Predicated region
  $region18: #{_lambda_.4} parent=0 // pred_check
    _
  $region19: #{_lambda_.4} parent=0 // pred_check_branch
    %38 = sbr.rel (0) target = $region21
  $region20: #{_lambda_.4} parent=0 // pred_region
    _
  $region21: #{_lambda_.4} parent=0 // pred_fallthru
    _
  // Predicated region
  $region22: #{_lambda_.4} parent=0 // pred_check
    _
  $region23: #{_lambda_.4} parent=0 // pred_check_branch
    %40 = sbr.rel (0) target = $region25
  $region24: #{_lambda_.4} parent=0 // pred_region
    _
  $region25: #{_lambda_.4} parent=0 // pred_fallthru
    _
  // Predicated region
  $region26: #{_lambda_.4} parent=0 // pred_check
    _
  $region27: #{_lambda_.4} parent=0 // pred_check_branch
    %42 = sbr.rel (0) target = $region29
  $region28: #{_lambda_.4} parent=0 // pred_region
    _
  $region29: #{_lambda_.4} parent=0 // pred_fallthru
    _
  // Predicated region
  $region30: #{_lambda_.4} parent=0 // pred_check
    _
  $region31: #{_lambda_.4} parent=0 // pred_check_branch
    %44 = sbr.rel (0) target = $region33
  $region32: #{_lambda_.4} parent=0 // pred_region
    _
  $region33: #{_lambda_.4} parent=0 // pred_fallthru
    _
  // Predicated region
  $region34: #{_lambda_.4} parent=0 // pred_check
    _
  $region35: #{_lambda_.4} parent=0 // pred_check_branch
    %46 = sbr.rel (0) target = $region37
  $region36: #{_lambda_.4} parent=0 // pred_region
    _
  $region37: #{_lambda_.4} parent=0 // pred_fallthru
    _
  // Predicated region
  $region38: #{_lambda_.4} parent=0 // pred_check
    _
  $region39: #{_lambda_.4} parent=0 // pred_check_branch
    %48 = sbr.rel (0) target = $region41
  $region40: #{_lambda_.4} parent=0 // pred_region
    _
  $region41: #{_lambda_.4} parent=0 // pred_fallthru
    _
  // Predicated region
  $region42: #{_lambda_.4} parent=0 // pred_check
    _
  $region43: #{_lambda_.4} parent=0 // pred_check_branch
    %50 = sbr.rel (0) target = $region45
  $region44: #{_lambda_.4} parent=0 // pred_region
    _
  $region45: #{_lambda_.4} parent=0 // pred_fallthru
    _
  // Predicated region
  $region46: #{_lambda_.4} parent=0 // pred_check
    _
  $region47: #{_lambda_.4} parent=0 // pred_check_branch
    %52 = sbr.rel (0) target = $region49
  $region48: #{_lambda_.4} parent=0 // pred_region
    _
  $region49: #{_lambda_.4} parent=0 // pred_fallthru
    _
  // Predicated region
  $region50: #{_lambda_.4} parent=0 // pred_check
    _
  $region51: #{_lambda_.4} parent=0 // pred_check_branch
    %54 = sbr.rel (0) target = $region53
  $region52: #{_lambda_.4} parent=0 // pred_region
    _
  $region53: #{_lambda_.4} parent=0 // pred_fallthru
    _
  // Predicated region
  $region54: #{_lambda_.4} parent=0 // pred_check
    _
  $region55: #{_lambda_.4} parent=0 // pred_check_branch
    %56 = sbr.rel (0) target = $region57
  $region56: #{_lambda_.4} parent=0 // pred_region
    _
  $region57: #{_lambda_.4} parent=0 // pred_fallthru
    _
  // Predicated region
  $region58: #{_lambda_.4} parent=0 // pred_check
    _
  $region59: #{_lambda_.4} parent=0 // pred_check_branch
    %58 = sbr.rel (0) target = $region61
  $region60: #{_lambda_.4} parent=0 // pred_region
    _
  $region61: #{_lambda_.4} parent=0 // pred_fallthru
    _
  // Predicated region
  $region62: #{_lambda_.4} parent=0 // pred_check
    _
  $region63: #{_lambda_.4} parent=0 // pred_check_branch
    %60 = sbr.rel (0) target = $region65
  $region64: #{_lambda_.4} parent=0 // pred_region
    _
  $region65: #{_lambda_.4} parent=0 // pred_fallthru
    _
  // Predicated region
  $region66: #{_lambda_.4} parent=0 // pred_check
    _
  $region67: #{_lambda_.4} parent=0 // pred_check_branch
    %62 = sbr.rel (0) target = $region69
  $region68: #{_lambda_.4} parent=0 // pred_region
    _
  $region69: #{_lambda_.4} parent=0 // pred_fallthru
    _
  // Predicated region
  $region70: #{_lambda_.4} parent=0 // pred_check
    _
  $region71: #{_lambda_.4} parent=0 // pred_check_branch
    %64 = sbr.rel (0) target = $region73
  $region72: #{_lambda_.4} parent=0 // pred_region
    _
  $region73: #{_lambda_.4} parent=0 // pred_fallthru
    _
  // Predicated region
  $region74: #{_lambda_.4} parent=0 // pred_check
    _
  $region75: #{_lambda_.4} parent=0 // pred_check_branch
    %66 = sbr.rel (0) target = $region77
  $region76: #{_lambda_.4} parent=0 // pred_region
    _
  $region77: #{_lambda_.4} parent=0 // pred_fallthru
    _
  // Predicated region
  $region78: #{_lambda_.4} parent=0 // pred_check
    _
  $region79: #{_lambda_.4} parent=0 // pred_check_branch
    %68 = sbr.rel (0) target = $region81
  $region80: #{_lambda_.4} parent=0 // pred_region
    _
  $region81: #{_lambda_.4} parent=0 // pred_fallthru
    _
  // Predicated region
  $region82: #{_lambda_.4} parent=0 // pred_check
    _
  $region83: #{_lambda_.4} parent=0 // pred_check_branch
    %70 = sbr.rel (0) target = $region85
  $region84: #{_lambda_.4} parent=0 // pred_region
    _
  $region85: #{_lambda_.4} parent=0 // pred_fallthru
    _
  // Predicated region
  $region86: #{_lambda_.4} parent=0 // pred_check
    _
  $region87: #{_lambda_.4} parent=0 // pred_check_branch
    %72 = sbr.rel (0) target = $region89
  $region88: #{_lambda_.4} parent=0 // pred_region
    _
  $region89: #{_lambda_.4} parent=0 // pred_fallthru
    _
  // Predicated region
  $region90: #{_lambda_.4} parent=0 // pred_check
    _
  $region91: #{_lambda_.4} parent=0 // pred_check_branch
    %74 = sbr.rel (0) target = $region93
  $region92: #{_lambda_.4} parent=0 // pred_region
    _
  $region93: #{_lambda_.4} parent=0 // pred_fallthru
    _
  // Predicated region
  $region94: #{_lambda_.4} parent=0 // pred_check
    _
  $region95: #{_lambda_.4} parent=0 // pred_check_branch
    %76 = sbr.rel (0) target = $region97
  $region96: #{_lambda_.4} parent=0 // pred_region
    _
  $region97: #{_lambda_.4} parent=0 // pred_fallthru
    _
  %v77 = vld [vmem:[%s0] sm:$0xff]
  %v78 = vld [vmem:[%s0 + $0x8] sm:$0xff]
  %v79 = vld [vmem:[%s1] sm:$0xff]
  %v80 = vld [vmem:[%s1 + $0x8] sm:$0xff]
  %v81 = vld [vmem:[%s4] sm:$0xff]
  %v82 = vld [vmem:[%s4 + $0x8] sm:$0xff]
  %v83 = vld [vmem:[%s4 + $0x10] sm:$0xff]
  %v84 = vld [vmem:[%s4 + $0x18] sm:$0xff]
  %v85 = vld [vmem:[%s5] sm:$0x1]
  %v87 = vperm.slane %v85, 0
  %vm89 = vcmask 261120
  %v91 = vsel %vm89, %v77, 0
  %v94 = vsel %vm89, %v78, 0
  %96 = vmatpush.msra.mxu0 0.0
  %97 = vmatpush.msra.mxu0 0.0
  %98 = vmatpush.msra.mxu0 0.0
  %99 = vmatpush.msra.mxu0 0.0
  %100 = vmatpush.msra.mxu0 0.0
  %101 = vmatpush.msra.mxu0 0.0
  %102 = vmatpush.msra.mxu0 0.0
  %103 = vmatpush.msra.mxu0 0.0
  %104 = vmatpush.msra.mxu0 0.0
  %105 = vmatpush.msra.mxu0 0.0
  %106 = vmatpush.msra.mxu0 0.0
  %107 = vmatpush.msra.mxu0 0.0
  %108 = vmatpush.msra.mxu0 %v84
  %109 = vmatpush.msra.mxu0 %v83
  %110 = vmatpush.msra.mxu0 %v82
  %111 = vmatpush.msra.mxu0 %v81
  %112 = vmatmul.f32.gmra.mxu0 %v91
  %v113 = vpop.f32.mrf.mxu0
  %v114 = vadd.f32 %v87, %v113
  %115 = vmatmul.f32.gmra.mxu0 %v94
  %v116 = vpop.f32.mrf.mxu0
  %v117 = vadd.f32 %v87, %v116
  %118 = vdwg.mxu0
  %v119 = vld [vmem:[%s2] sm:$0xff]
  %v120 = vld [vmem:[%s2 + $0x8] sm:$0xff]
  %123 = vrot.lane.b32.xlu0 %v114, 96
  %v124 = vpop.permute.xlu0 %123
  %125 = vrot.lane.b32.xlu0 %v117, 96
  %v126 = vpop.permute.xlu0 %125
  %v127 = vsel %vm89, %v114, 0
  %v129 = vsel %vm89, %v117, 0
  %v131 = vsel %vm89, %v124, 0
  %v133 = vsel %vm89, %v126, 0
  %135 = vmatpush.xpose.msra.mxu0 0.0
  %136 = vmatpush.xpose.msra.mxu0 0.0
  %137 = vmatpush.xpose.msra.mxu0 0.0
  %138 = vmatpush.xpose.msra.mxu0 0.0
  %139 = vmatpush.xpose.msra.mxu0 0.0
  %140 = vmatpush.xpose.msra.mxu0 0.0
  %141 = vmatpush.xpose.msra.mxu0 0.0
  %142 = vmatpush.xpose.msra.mxu0 0.0
  %143 = vmatpush.xpose.msra.mxu0 0.0
  %144 = vmatpush.xpose.msra.mxu0 0.0
  %145 = vmatpush.xpose.msra.mxu0 0.0
  %146 = vmatpush.xpose.msra.mxu0 0.0
  %147 = vmatpush.xpose.msra.mxu0 0.0
  %148 = vmatpush.xpose.msra.mxu0 0.0
  %149 = vmatpush.xpose.msra.mxu0 %v133
  %150 = vmatpush.xpose.msra.mxu0 %v131
  %151 = vmatmul.f32.gmra.mxu0 %v127
  %v152 = vpop.f32.mrf.mxu0
  %v153 = vadd.f32 0.0, %v152
  %154 = vmatmul.f32.gmra.mxu0 %v129
  %v155 = vpop.f32.mrf.mxu0
  %v156 = vadd.f32 0.0, %v155
  %157 = vdwg.mxu0
  %vm158 = vcmp.gt.f32.partialorder %v119, 0.0
  %vm159 = vcmp.gt.f32.partialorder %v120, 0.0
  %v160 = vsel %vm158, %v153, -1e+09
  %v161 = vsel %vm159, %v156, -1e+09
  %vm162 = vcmask 130048
  %v163 = vsel %vm162, %v160, -inf
  %164 = vmax.xlane.f32.xlu0 %v163
  %v165 = vpop.xlane.xlu0 %164
  %v166 = vsel %vm162, %v161, -inf
  %167 = vmax.xlane.f32.xlu0 %v166
  %v168 = vpop.xlane.xlu0 %167
  %v169 = vsub.f32 %v160, %v165
  %v170 = vsub.f32 %v161, %v168
  %v171 = vmul.f32 %v169, 1.442695
  %v172 = vpow.pop %v171
  %v173 = vmul.f32 %v170, 1.442695
  %v174 = vpow.pop %v173
  %v175 = vsel %vm162, %v172, 0.0
  %176 = vadd.xlane.f32.xlu0 %v175
  %v177 = vpop.xlane.xlu0 %176
  %v178 = vsel %vm162, %v174, 0.0
  %179 = vadd.xlane.f32.xlu0 %v178
  %v180 = vpop.xlane.xlu0 %179
  %v181 = vrcp.pop %v177
  %v182 = vrcp.pop %v180
  %v183 = vmul.f32 %v172, %v181
  %v184 = vmul.f32 %v174, %v182
  %185 = vrot.lane.b32.xlu0 %v114, 64
  %v186 = vpop.permute.xlu0 %185
  %187 = vrot.lane.b32.xlu0 %v117, 64
  %v188 = vpop.permute.xlu0 %187
  %v192 = vsel %vm162, %v183, 0
  %v195 = vsel %vm162, %v184, 0
  %197 = vmatpush.msra.mxu0 0.0
  %198 = vmatpush.msra.mxu0 0.0
  %199 = vmatpush.msra.mxu0 0.0
  %200 = vmatpush.msra.mxu0 0.0
  %201 = vmatpush.msra.mxu0 0.0
  %202 = vmatpush.msra.mxu0 0.0
  %203 = vmatpush.msra.mxu0 0.0
  %204 = vmatpush.msra.mxu0 0.0
  %205 = vmatpush.msra.mxu0 0.0
  %206 = vmatpush.msra.mxu0 0.0
  %207 = vmatpush.msra.mxu0 0.0
  %208 = vmatpush.msra.mxu0 0.0
  %209 = vmatpush.msra.mxu0 0.0
  %210 = vmatpush.msra.mxu0 0.0
  %211 = vmatpush.msra.mxu0 %v188
  %212 = vmatpush.msra.mxu0 %v186
  %213 = vmatmul.f32.gmra.mxu0 %v192
  %v214 = vpop.f32.mrf.mxu0
  %v215 = vadd.f32 0.0, %v214
  %216 = vmatmul.f32.gmra.mxu0 %v195
  %v217 = vpop.f32.mrf.mxu0
  %v218 = vadd.f32 0.0, %v217
  %219 = vdwg.mxu0
  %v220 = vld [vmem:[%s6] sm:$0xff]
  %v221 = vld [vmem:[%s6 + $0x8] sm:$0xff]
  %v222 = vld [vmem:[%s6 + $0x10] sm:$0xff]
  %v223 = vld [vmem:[%s6 + $0x18] sm:$0xff]
  %v224 = vld [vmem:[%s7] sm:$0x1]
  %v226 = vperm.slane %v224, 0
  %v229 = vsel %vm89, %v215, 0
  %v232 = vsel %vm89, %v218, 0
  %234 = vmatpush.msra.mxu0 0.0
  %235 = vmatpush.msra.mxu0 0.0
  %236 = vmatpush.msra.mxu0 0.0
  %237 = vmatpush.msra.mxu0 0.0
  %238 = vmatpush.msra.mxu0 0.0
  %239 = vmatpush.msra.mxu0 0.0
  %240 = vmatpush.msra.mxu0 0.0
  %241 = vmatpush.msra.mxu0 0.0
  %242 = vmatpush.msra.mxu0 0.0
  %243 = vmatpush.msra.mxu0 0.0
  %244 = vmatpush.msra.mxu0 0.0
  %245 = vmatpush.msra.mxu0 0.0
  %246 = vmatpush.msra.mxu0 %v223
  %247 = vmatpush.msra.mxu0 %v222
  %248 = vmatpush.msra.mxu0 %v221
  %249 = vmatpush.msra.mxu0 %v220
  %250 = vmatmul.f32.gmra.mxu0 %v229
  %v251 = vpop.f32.mrf.mxu0
  %v252 = vadd.f32 %v226, %v251
  %253 = vmatmul.f32.gmra.mxu0 %v232
  %v254 = vpop.f32.mrf.mxu0
  %v255 = vadd.f32 %v226, %v254
  %256 = vdwg.mxu0
  %v257 = vadd.f32 %v77, %v252
  %v258 = vadd.f32 %v78, %v255
  %v259 = vld [vmem:[%s8] sm:$0x1]
  %v260 = vld [vmem:[%s9] sm:$0x1]
  %v261 = vsel %vm89, %v257, 0.0
  %262 = vadd.xlane.f32.xlu0 %v261
  %v263 = vpop.xlane.xlu0 %262
  %v264 = vsel %vm89, %v258, 0.0
  %265 = vadd.xlane.f32.xlu0 %v264
  %v266 = vpop.xlane.xlu0 %265
  %v267 = vrcp.pop 32.0
  %v268 = vmul.f32 32.0, %v267
  %v269 = vsub.f32 1.0, %v268
  %v270 = vmul.f32 %v267, %v269
  %v271 = vadd.f32 %v267, %v270
  %vm272 = vweird.f32 %v267
  %v273 = vsel %vm272, %v267, %v271
  %v274 = vmul.f32 %v263, %v273
  %v275 = vmul.f32 %v266, %v273
  %v276 = vsub.f32 %v257, %v274
  %v277 = vsub.f32 %v258, %v275
  %v278 = vmul.f32 %v276, %v276
  %v279 = vmul.f32 %v277, %v277
  %v280 = vsel %vm89, %v278, 0.0
  %281 = vadd.xlane.f32.xlu0 %v280
  %v282 = vpop.xlane.xlu0 %281
  %v283 = vsel %vm89, %v279, 0.0
  %284 = vadd.xlane.f32.xlu0 %v283
  %v285 = vpop.xlane.xlu0 %284
  %v286 = vmul.f32 %v282, %v273
  %v287 = vmul.f32 %v285, %v273
  %v288 = vadd.f32 %v286, 1e-05
  %v289 = vadd.f32 %v287, 1e-05
  %v290 = vrsqrt.pop %v288
  %v291 = vmul.f32 %v290, %v288
  %v292 = vmul.f32 %v291, %v290
  %v293 = vmul.f32 0.5, %v292
  %v294 = vsub.f32 1.5, %v293
  %v295 = vmul.f32 %v290, %v294
  %vm296 = vweird.f32 %v288
  %vm297 = vweird.f32 %v290
  %vm298 = vmor %vm296, %vm297
  %v299 = vsel %vm298, %v290, %v295
  %v300 = vrsqrt.pop %v289
  %v301 = vmul.f32 %v300, %v289
  %v302 = vmul.f32 %v301, %v300
  %v303 = vmul.f32 0.5, %v302
  %v304 = vsub.f32 1.5, %v303
  %v305 = vmul.f32 %v300, %v304
  %vm306 = vweird.f32 %v289
  %vm307 = vweird.f32 %v300
  %vm308 = vmor %vm306, %vm307
  %v309 = vsel %vm308, %v300, %v305
  %v310 = vmul.f32 %v276, %v299
  %v311 = vmul.f32 %v277, %v309
  %v313 = vperm.slane %v259, 0
  %v315 = vmul.f32 %v310, %v313
  %v316 = vmul.f32 %v311, %v313
  %v318 = vperm.slane %v260, 0
  %v320 = vadd.f32 %v315, %v318
  %v321 = vadd.f32 %v316, %v318
  %v322 = vld [vmem:[%s10] sm:$0xff]
  %v323 = vld [vmem:[%s10 + $0x8] sm:$0xff]
  %v324 = vld [vmem:[%s10 + $0x10] sm:$0xff]
  %v325 = vld [vmem:[%s10 + $0x18] sm:$0xff]
  %v326 = vld [vmem:[%s11] sm:$0x1]
  %v328 = vperm.slane %v326, 0
  %v331 = vsel %vm89, %v320, 0
  %v334 = vsel %vm89, %v321, 0
  %336 = vmatpush.msra.mxu0 0.0
  %337 = vmatpush.msra.mxu0 0.0
  %338 = vmatpush.msra.mxu0 0.0
  %339 = vmatpush.msra.mxu0 0.0
  %340 = vmatpush.msra.mxu0 0.0
  %341 = vmatpush.msra.mxu0 0.0
  %342 = vmatpush.msra.mxu0 0.0
  %343 = vmatpush.msra.mxu0 0.0
  %344 = vmatpush.msra.mxu0 0.0
  %345 = vmatpush.msra.mxu0 0.0
  %346 = vmatpush.msra.mxu0 0.0
  %347 = vmatpush.msra.mxu0 0.0
  %348 = vmatpush.msra.mxu0 %v325
  %349 = vmatpush.msra.mxu0 %v324
  %350 = vmatpush.msra.mxu0 %v323
  %351 = vmatpush.msra.mxu0 %v322
  %352 = vmatmul.f32.gmra.mxu0 %v331
  %v353 = vpop.f32.mrf.mxu0
  %v354 = vadd.f32 %v328, %v353
  %355 = vmatmul.f32.gmra.mxu0 %v334
  %v356 = vpop.f32.mrf.mxu0
  %v357 = vadd.f32 %v328, %v356
  %358 = vdwg.mxu0
  %v359 = vld [vmem:[%s12] sm:$0xff]
  %v360 = vld [vmem:[%s12 + $0x8] sm:$0xff]
  %v361 = vld [vmem:[%s12 + $0x10] sm:$0xff]
  %v362 = vld [vmem:[%s12 + $0x18] sm:$0xff]
  %v363 = vld [vmem:[%s13] sm:$0x1]
  %v365 = vperm.slane %v363, 0
  %v368 = vsel %vm89, %v79, 0
  %v371 = vsel %vm89, %v80, 0
  %373 = vmatpush.msra.mxu0 0.0
  %374 = vmatpush.msra.mxu0 0.0
  %375 = vmatpush.msra.mxu0 0.0
  %376 = vmatpush.msra.mxu0 0.0
  %377 = vmatpush.msra.mxu0 0.0
  %378 = vmatpush.msra.mxu0 0.0
  %379 = vmatpush.msra.mxu0 0.0
  %380 = vmatpush.msra.mxu0 0.0
  %381 = vmatpush.msra.mxu0 0.0
  %382 = vmatpush.msra.mxu0 0.0
  %383 = vmatpush.msra.mxu0 0.0
  %384 = vmatpush.msra.mxu0 0.0
  %385 = vmatpush.msra.mxu0 %v362
  %386 = vmatpush.msra.mxu0 %v361
  %387 = vmatpush.msra.mxu0 %v360
  %388 = vmatpush.msra.mxu0 %v359
  %389 = vmatmul.f32.gmra.mxu0 %v368
  %v390 = vpop.f32.mrf.mxu0
  %v391 = vadd.f32 %v365, %v390
  %392 = vmatmul.f32.gmra.mxu0 %v371
  %v393 = vpop.f32.mrf.mxu0
  %v394 = vadd.f32 %v365, %v393
  %395 = vdwg.mxu0
  %v396 = vld [vmem:[%s3] sm:$0xff]
  %v397 = vld [vmem:[%s3 + $0x8] sm:$0xff]
  %v399 = vsel %vm89, %v354, 0
  %v402 = vsel %vm89, %v357, 0
  %v405 = vsel %vm89, %v391, 0
  %v408 = vsel %vm89, %v394, 0
  %410 = vmatpush.xpose.msra.mxu0 0.0
  %411 = vmatpush.xpose.msra.mxu0 0.0
  %412 = vmatpush.xpose.msra.mxu0 0.0
  %413 = vmatpush.xpose.msra.mxu0 0.0
  %414 = vmatpush.xpose.msra.mxu0 0.0
  %415 = vmatpush.xpose.msra.mxu0 0.0
  %416 = vmatpush.xpose.msra.mxu0 0.0
  %417 = vmatpush.xpose.msra.mxu0 0.0
  %418 = vmatpush.xpose.msra.mxu0 0.0
  %419 = vmatpush.xpose.msra.mxu0 0.0
  %420 = vmatpush.xpose.msra.mxu0 0.0
  %421 = vmatpush.xpose.msra.mxu0 0.0
  %422 = vmatpush.xpose.msra.mxu0 0.0
  %423 = vmatpush.xpose.msra.mxu0 0.0
  %424 = vmatpush.xpose.msra.mxu0 %v408
  %425 = vmatpush.xpose.msra.mxu0 %v405
  %426 = vmatmul.f32.gmra.mxu0 %v399
  %v427 = vpop.f32.mrf.mxu0
  %v428 = vadd.f32 0.0, %v427
  %429 = vmatmul.f32.gmra.mxu0 %v402
  %v430 = vpop.f32.mrf.mxu0
  %v431 = vadd.f32 0.0, %v430
  %432 = vdwg.mxu0
  %vm433 = vcmp.gt.f32.partialorder %v396, 0.0
  %vm434 = vcmp.gt.f32.partialorder %v397, 0.0
  %v435 = vsel %vm433, %v428, -1e+09
  %v436 = vsel %vm434, %v431, -1e+09
  %v437 = vsel %vm162, %v435, -inf
  %438 = vmax.xlane.f32.xlu0 %v437
  %v439 = vpop.xlane.xlu0 %438
  %v440 = vsel %vm162, %v436, -inf
  %441 = vmax.xlane.f32.xlu0 %v440
  %v442 = vpop.xlane.xlu0 %441
  %v443 = vsub.f32 %v435, %v439
  %v444 = vsub.f32 %v436, %v442
  %v445 = vmul.f32 %v443, 1.442695
  %v446 = vpow.pop %v445
  %v447 = vmul.f32 %v444, 1.442695
  %v448 = vpow.pop %v447
  %v449 = vsel %vm162, %v446, 0.0
  %450 = vadd.xlane.f32.xlu0 %v449
  %v451 = vpop.xlane.xlu0 %450
  %v452 = vsel %vm162, %v448, 0.0
  %453 = vadd.xlane.f32.xlu0 %v452
  %v454 = vpop.xlane.xlu0 %453
  %v455 = vrcp.pop %v451
  %v456 = vrcp.pop %v454
  %v457 = vmul.f32 %v446, %v455
  %v458 = vmul.f32 %v448, %v456
  %459 = vrot.lane.b32.xlu0 %v391, 96
  %v460 = vpop.permute.xlu0 %459
  %461 = vrot.lane.b32.xlu0 %v394, 96
  %v462 = vpop.permute.xlu0 %461
  %v466 = vsel %vm162, %v457, 0
  %v469 = vsel %vm162, %v458, 0
  %471 = vmatpush.msra.mxu0 0.0
  %472 = vmatpush.msra.mxu0 0.0
  %473 = vmatpush.msra.mxu0 0.0
  %474 = vmatpush.msra.mxu0 0.0
  %475 = vmatpush.msra.mxu0 0.0
  %476 = vmatpush.msra.mxu0 0.0
  %477 = vmatpush.msra.mxu0 0.0
  %478 = vmatpush.msra.mxu0 0.0
  %479 = vmatpush.msra.mxu0 0.0
  %480 = vmatpush.msra.mxu0 0.0
  %481 = vmatpush.msra.mxu0 0.0
  %482 = vmatpush.msra.mxu0 0.0
  %483 = vmatpush.msra.mxu0 0.0
  %484 = vmatpush.msra.mxu0 0.0
  %485 = vmatpush.msra.mxu0 %v462
  %486 = vmatpush.msra.mxu0 %v460
  %487 = vmatmul.f32.gmra.mxu0 %v466
  %v488 = vpop.f32.mrf.mxu0
  %v489 = vadd.f32 0.0, %v488
  %490 = vmatmul.f32.gmra.mxu0 %v469
  %v491 = vpop.f32.mrf.mxu0
  %v492 = vadd.f32 0.0, %v491
  %493 = vdwg.mxu0
  %v494 = vld [vmem:[%s14] sm:$0xff]
  %v495 = vld [vmem:[%s14 + $0x8] sm:$0xff]
  %v496 = vld [vmem:[%s14 + $0x10] sm:$0xff]
  %v497 = vld [vmem:[%s14 + $0x18] sm:$0xff]
  %v498 = vld [vmem:[%s15] sm:$0x1]
  %v500 = vperm.slane %v498, 0
  %v503 = vsel %vm89, %v489, 0
  %v506 = vsel %vm89, %v492, 0
  %508 = vmatpush.msra.mxu0 0.0
  %509 = vmatpush.msra.mxu0 0.0
  %510 = vmatpush.msra.mxu0 0.0
  %511 = vmatpush.msra.mxu0 0.0
  %512 = vmatpush.msra.mxu0 0.0
  %513 = vmatpush.msra.mxu0 0.0
  %514 = vmatpush.msra.mxu0 0.0
  %515 = vmatpush.msra.mxu0 0.0
  %516 = vmatpush.msra.mxu0 0.0
  %517 = vmatpush.msra.mxu0 0.0
  %518 = vmatpush.msra.mxu0 0.0
  %519 = vmatpush.msra.mxu0 0.0
  %520 = vmatpush.msra.mxu0 %v497
  %521 = vmatpush.msra.mxu0 %v496
  %522 = vmatpush.msra.mxu0 %v495
  %523 = vmatpush.msra.mxu0 %v494
  %524 = vmatmul.f32.gmra.mxu0 %v503
  %v525 = vpop.f32.mrf.mxu0
  %v526 = vadd.f32 %v500, %v525
  %527 = vmatmul.f32.gmra.mxu0 %v506
  %v528 = vpop.f32.mrf.mxu0
  %v529 = vadd.f32 %v500, %v528
  %530 = vdwg.mxu0
  %v531 = vadd.f32 %v320, %v526
  %v532 = vadd.f32 %v321, %v529
  %v533 = vld [vmem:[%s16] sm:$0x1]
  %v534 = vld [vmem:[%s17] sm:$0x1]
  %v535 = vsel %vm89, %v531, 0.0
  %536 = vadd.xlane.f32.xlu0 %v535
  %v537 = vpop.xlane.xlu0 %536
  %v538 = vsel %vm89, %v532, 0.0
  %539 = vadd.xlane.f32.xlu0 %v538
  %v540 = vpop.xlane.xlu0 %539
  %v541 = vmul.f32 %v537, %v273
  %v542 = vmul.f32 %v540, %v273
  %v543 = vsub.f32 %v531, %v541
  %v544 = vsub.f32 %v532, %v542
  %v545 = vmul.f32 %v543, %v543
  %v546 = vmul.f32 %v544, %v544
  %v547 = vsel %vm89, %v545, 0.0
  %548 = vadd.xlane.f32.xlu0 %v547
  %v549 = vpop.xlane.xlu0 %548
  %v550 = vsel %vm89, %v546, 0.0
  %551 = vadd.xlane.f32.xlu0 %v550
  %v552 = vpop.xlane.xlu0 %551
  %v553 = vmul.f32 %v549, %v273
  %v554 = vmul.f32 %v552, %v273
  %v555 = vadd.f32 %v553, 1e-05
  %v556 = vadd.f32 %v554, 1e-05
  %v557 = vrsqrt.pop %v555
  %v558 = vmul.f32 %v557, %v555
  %v559 = vmul.f32 %v558, %v557
  %v560 = vmul.f32 0.5, %v559
  %v561 = vsub.f32 1.5, %v560
  %v562 = vmul.f32 %v557, %v561
  %vm563 = vweird.f32 %v555
  %vm564 = vweird.f32 %v557
  %vm565 = vmor %vm563, %vm564
  %v566 = vsel %vm565, %v557, %v562
  %v567 = vrsqrt.pop %v556
  %v568 = vmul.f32 %v567, %v556
  %v569 = vmul.f32 %v568, %v567
  %v570 = vmul.f32 0.5, %v569
  %v571 = vsub.f32 1.5, %v570
  %v572 = vmul.f32 %v567, %v571
  %vm573 = vweird.f32 %v556
  %vm574 = vweird.f32 %v567
  %vm575 = vmor %vm573, %vm574
  %v576 = vsel %vm575, %v567, %v572
  %v577 = vmul.f32 %v543, %v566
  %v578 = vmul.f32 %v544, %v576
  %v580 = vperm.slane %v533, 0
  %v582 = vmul.f32 %v577, %v580
  %v583 = vmul.f32 %v578, %v580
  %v585 = vperm.slane %v534, 0
  %v587 = vadd.f32 %v582, %v585
  %v588 = vadd.f32 %v583, %v585
  %v589 = vld [vmem:[%s18] sm:$0xff]
  %v590 = vld [vmem:[%s18 + $0x8] sm:$0xff]
  %v591 = vld [vmem:[%s18 + $0x10] sm:$0xff]
  %v592 = vld [vmem:[%s18 + $0x18] sm:$0xff]
  %v593 = vld [vmem:[%s19] sm:$0x1]
  %v595 = vperm.slane %v593, 0
  %v598 = vsel %vm89, %v587, 0
  %v601 = vsel %vm89, %v588, 0
  %603 = vmatpush.msra.mxu0 0.0
  %604 = vmatpush.msra.mxu0 0.0
  %605 = vmatpush.msra.mxu0 0.0
  %606 = vmatpush.msra.mxu0 0.0
  %607 = vmatpush.msra.mxu0 0.0
  %608 = vmatpush.msra.mxu0 0.0
  %609 = vmatpush.msra.mxu0 0.0
  %610 = vmatpush.msra.mxu0 0.0
  %611 = vmatpush.msra.mxu0 0.0
  %612 = vmatpush.msra.mxu0 0.0
  %613 = vmatpush.msra.mxu0 0.0
  %614 = vmatpush.msra.mxu0 0.0
  %615 = vmatpush.msra.mxu0 %v592
  %616 = vmatpush.msra.mxu0 %v591
  %617 = vmatpush.msra.mxu0 %v590
  %618 = vmatpush.msra.mxu0 %v589
  %619 = vmatmul.f32.gmra.mxu0 %v598
  %v620 = vpop.f32.mrf.mxu0
  %v621 = vadd.f32 %v595, %v620
  %622 = vmatmul.f32.gmra.mxu0 %v601
  %v623 = vpop.f32.mrf.mxu0
  %v624 = vadd.f32 %v595, %v623
  %625 = vdwg.mxu0
  %v626 = vmax.f32 %v621, 0.0
  %v627 = vmax.f32 %v624, 0.0
  %v628 = vld [vmem:[%s20] sm:$0xff]
  %v629 = vld [vmem:[%s20 + $0x8] sm:$0xff]
  %v630 = vld [vmem:[%s20 + $0x10] sm:$0xff]
  %v631 = vld [vmem:[%s20 + $0x18] sm:$0xff]
  %v632 = vld [vmem:[%s20 + $0x20] sm:$0xff]
  %v633 = vld [vmem:[%s20 + $0x28] sm:$0xff]
  %v634 = vld [vmem:[%s20 + $0x30] sm:$0xff]
  %v635 = vld [vmem:[%s20 + $0x38] sm:$0xff]
  %v636 = vld [vmem:[%s21] sm:$0x1]
  %v638 = vperm.slane %v636, 0
  %vm640 = vcmask 523264
  %v642 = vsel %vm640, %v626, 0
  %v645 = vsel %vm640, %v627, 0
  %647 = vmatpush.msra.mxu0 0.0
  %648 = vmatpush.msra.mxu0 0.0
  %649 = vmatpush.msra.mxu0 0.0
  %650 = vmatpush.msra.mxu0 0.0
  %651 = vmatpush.msra.mxu0 0.0
  %652 = vmatpush.msra.mxu0 0.0
  %653 = vmatpush.msra.mxu0 0.0
  %654 = vmatpush.msra.mxu0 0.0
  %655 = vmatpush.msra.mxu0 %v635
  %656 = vmatpush.msra.mxu0 %v634
  %657 = vmatpush.msra.mxu0 %v633
  %658 = vmatpush.msra.mxu0 %v632
  %659 = vmatpush.msra.mxu0 %v631
  %660 = vmatpush.msra.mxu0 %v630
  %661 = vmatpush.msra.mxu0 %v629
  %662 = vmatpush.msra.mxu0 %v628
  %663 = vmatmul.f32.gmra.mxu0 %v642
  %v664 = vpop.f32.mrf.mxu0
  %v665 = vadd.f32 %v638, %v664
  %666 = vmatmul.f32.gmra.mxu0 %v645
  %v667 = vpop.f32.mrf.mxu0
  %v668 = vadd.f32 %v638, %v667
  %669 = vdwg.mxu0
  %v670 = vadd.f32 %v587, %v665
  %v671 = vadd.f32 %v588, %v668
  %v672 = vld [vmem:[%s22] sm:$0x1]
  %v673 = vld [vmem:[%s23] sm:$0x1]
  %v674 = vsel %vm89, %v670, 0.0
  %675 = vadd.xlane.f32.xlu0 %v674
  %v676 = vpop.xlane.xlu0 %675
  %v677 = vsel %vm89, %v671, 0.0
  %678 = vadd.xlane.f32.xlu0 %v677
  %v679 = vpop.xlane.xlu0 %678
  %v680 = vmul.f32 %v676, %v273
  %v681 = vmul.f32 %v679, %v273
  %v682 = vsub.f32 %v670, %v680
  %v683 = vsub.f32 %v671, %v681
  %v684 = vmul.f32 %v682, %v682
  %v685 = vmul.f32 %v683, %v683
  %v686 = vsel %vm89, %v684, 0.0
  %687 = vadd.xlane.f32.xlu0 %v686
  %v688 = vpop.xlane.xlu0 %687
  %v689 = vsel %vm89, %v685, 0.0
  %690 = vadd.xlane.f32.xlu0 %v689
  %v691 = vpop.xlane.xlu0 %690
  %v692 = vmul.f32 %v688, %v273
  %v693 = vmul.f32 %v691, %v273
  %v694 = vadd.f32 %v692, 1e-05
  %v695 = vadd.f32 %v693, 1e-05
  %v696 = vrsqrt.pop %v694
  %v697 = vmul.f32 %v696, %v694
  %v698 = vmul.f32 %v697, %v696
  %v699 = vmul.f32 0.5, %v698
  %v700 = vsub.f32 1.5, %v699
  %v701 = vmul.f32 %v696, %v700
  %vm702 = vweird.f32 %v694
  %vm703 = vweird.f32 %v696
  %vm704 = vmor %vm702, %vm703
  %v705 = vsel %vm704, %v696, %v701
  %v706 = vrsqrt.pop %v695
  %v707 = vmul.f32 %v706, %v695
  %v708 = vmul.f32 %v707, %v706
  %v709 = vmul.f32 0.5, %v708
  %v710 = vsub.f32 1.5, %v709
  %v711 = vmul.f32 %v706, %v710
  %vm712 = vweird.f32 %v695
  %vm713 = vweird.f32 %v706
  %vm714 = vmor %vm712, %vm713
  %v715 = vsel %vm714, %v706, %v711
  %v716 = vmul.f32 %v682, %v705
  %v717 = vmul.f32 %v683, %v715
  %v719 = vperm.slane %v672, 0
  %v721 = vmul.f32 %v716, %v719
  %v722 = vmul.f32 %v717, %v719
  %v724 = vperm.slane %v673, 0
  %v726 = vadd.f32 %v721, %v724
  %v727 = vadd.f32 %v722, %v724
  %728 = vst.msk [vmem:[%s24] sm:$0xff] %vm89, %v726
  %729 = vst.msk [vmem:[%s24 + $0x8] sm:$0xff] %vm89, %v727
  // Predicated region
  $region98: #{_lambda_.4} parent=0 // pred_check
    _
  $region99: #{_lambda_.4} parent=0 // pred_check_branch
    %731 = sbr.rel (0) target = $region101
  $region100: #{_lambda_.4} parent=0 // pred_region
    _
  $region101: #{_lambda_.4} parent=0 // pred_fallthru
    _
  // Predicated region
  $region102: #{_lambda_.4} parent=0 // pred_check
    _
  $region103: #{_lambda_.4} parent=0 // pred_check_branch
    %733 = sbr.rel (0) target = $region105
  $region104: #{_lambda_.4} parent=0 // pred_region
    _
  $region105: #{_lambda_.4} parent=0 // pred_fallthru
    _

</llo_original>
